<compile_context>
chip_gen: v7x
topology: tpu7x:2x2x1
jax: 0.10.0
libtpu: 0.0.40
codegen_flags: <defaults>
</compile_context>

<pallas_src>
import functools
import math

import jax
import jax.numpy as jnp
from jax.experimental import pallas as pl
from jax.experimental.pallas import tpu as pltpu


# ----------------------------------------------------------------------------
# Small helpers (glue, plain JAX)
# ----------------------------------------------------------------------------
def layer_norm(x, weight=None, bias=None, eps=1e-5):
    mean = jnp.mean(x, axis=-1, keepdims=True)
    var = jnp.mean((x - mean) ** 2, axis=-1, keepdims=True)
    y = (x - mean) / jnp.sqrt(var + eps)
    if weight is not None:
        y = y * weight
    if bias is not None:
        y = y + bias
    return y


# ----------------------------------------------------------------------------
# Pallas kernel: per-(batch, sample) head-fused biased attention
# ----------------------------------------------------------------------------
def _attn_kernel(q_ref, k_ref, v_ref, mb_ref, pb_ref, o_ref, *,
                 num_heads, c_hidden):
    # q_ref/k_ref/v_ref/o_ref: (N, H*C) lane-dense slabs (bf16 in, f32 out)
    # mb_ref: (1, N) f32 mask bias;  pb_ref: (H, N, N) f32 pair bias.
    mb = mb_ref[...]                                          # (1, N)
    for h in range(num_heads):                                # static, unrolled
        sl = pl.ds(h * c_hidden, c_hidden)
        q = q_ref[:, sl]                                      # (N, C) bf16 (scale folded into wq)
        k = k_ref[:, sl]                                      # (N, C) bf16
        v = v_ref[:, sl]                                      # (N, C) bf16
        # Contract on the last dim of both operands -> no k transpose / copy.
        logits = jax.lax.dot_general(
            q, k, dimension_numbers=(((1,), (1,)), ((), ())),
            preferred_element_type=jnp.float32)               # (N, N) f32
        logits = logits + mb + pb_ref[h]                      # (1,N)+(N,N) broadcast
        m = jnp.max(logits, axis=-1, keepdims=True)
        p = jnp.exp(logits - m)
        denom = jnp.sum(p, axis=-1, keepdims=True)
        probs = p * pl.reciprocal(denom, approx=True)         # EUP reciprocal
        o = jnp.dot(probs.astype(v.dtype), v,
                    preferred_element_type=jnp.float32)       # (N, C) f32
        o_ref[:, sl] = o.astype(o_ref.dtype)
    # TODO(synk): for large N add a KV grid axis ("arbitrary") with f32
    # online-softmax accumulators in scratch (flash-style) so the (N,N)
    # logits/pair-bias tiles stay bounded within v7x's 64 MiB VMEM.


def pair_bias_attention(q, k, v, mask_bias, pair_bias, *, num_heads):
    """q/k/v: [B,S,N,dim] bf16; mask_bias: [B,S,1,N] f32; pair_bias: [B,H,N,N] f32.

    Returns o: [B,S,N,dim] f32 with head h occupying channels [h*C, (h+1)*C).
    """
    B, S, N, dim = q.shape
    H = num_heads
    C = dim // H

    def _padded_tile_bytes(rows, cols, itemsize):
        r = ((rows + 7) // 8) * 8
        c = ((cols + 127) // 128) * 128
        return r * c * itemsize

    # Double-buffered per-step VMEM footprint + margin for vreg spills etc.
    vmem_bytes = 2 * (3 * _padded_tile_bytes(N, dim, 2)       # q, k, v (bf16)
                      + _padded_tile_bytes(1, N, 4)           # mask bias
                      + H * _padded_tile_bytes(N, N, 4)       # pair bias
                      + _padded_tile_bytes(N, dim, 4))        # output
    vmem_bytes = int(min(vmem_bytes + (4 << 20), 64 << 20))

    cost = pl.CostEstimate(
        flops=4 * B * S * H * N * N * C,                       # QK^T + P@V
        transcendentals=B * S * H * N * N,                     # exp
        bytes_accessed=(3 * B * S * N * dim * 2                # q/k/v bf16
                        + B * H * N * N * 4                    # pair bias
                        + B * S * N * 4                        # mask bias
                        + B * S * N * dim * 4),                # output
    )

    kernel = functools.partial(_attn_kernel, num_heads=H, c_hidden=C)
    qkv_spec = pl.BlockSpec((None, None, N, dim), lambda b, s: (b, s, 0, 0))
    return pl.pallas_call(
        kernel,
        out_shape=jax.ShapeDtypeStruct((B, S, N, dim), jnp.float32),
        grid_spec=pltpu.PrefetchScalarGridSpec(
            num_scalar_prefetch=0,
            grid=(B, S),  # S innermost: pair_bias block index unchanged -> no re-DMA
            in_specs=[
                qkv_spec,                                             # q
                qkv_spec,                                             # k
                qkv_spec,                                             # v
                pl.BlockSpec((None, None, 1, N),                      # mask bias
                             lambda b, s: (b, s, 0, 0)),
                pl.BlockSpec((None, H, N, N),                         # pair bias
                             lambda b, s: (b, 0, 0, 0)),
            ],
            out_specs=pl.BlockSpec((None, None, N, dim),
                                   lambda b, s: (b, s, 0, 0)),
        ),
        compiler_params=pltpu.CompilerParams(
            dimension_semantics=("parallel", "parallel"),
            vmem_limit_bytes=vmem_bytes),
        cost_estimate=cost,
    )(q, k, v, mask_bias, pair_bias)


# ----------------------------------------------------------------------------
# Parameter initialization (deterministic, shapes match the PyTorch module)
# ----------------------------------------------------------------------------
def init_params(key, dim, c_pair, no_heads):
    ks = jax.random.split(key, 12)

    def w(k, shape):
        return (0.1 * jax.random.normal(k, shape)).astype(jnp.float32)

    hc = dim  # no_heads * c_hidden == dim
    scale = 1.0 / math.sqrt(dim // no_heads)   # folded into wq/bq once, at init
    p = {
        # AdaLN(dim): LN(a, no affine); LN(s, scale only); gate & skip linears
        "adaln_s_ln_w": (1.0 + 0.1 * jax.random.normal(ks[0], (dim,))).astype(jnp.float32),
        "adaln_gate_w": w(ks[1], (dim, dim)),
        "adaln_skip_w": w(ks[2], (dim, dim)),
        # output_proj_linear (input gating): Linear(dim, dim), bias = -2.0
        "out_gate_w": w(ks[3], (dim, dim)),
        "out_gate_b": jnp.full((dim,), -2.0, jnp.float32),
        # Attention(c_q=c_k=c_v=dim, c_hidden=dim//H, H heads, gating=True)
        "wq": w(ks[4], (hc, dim)) * scale,
        "bq": (0.1 * jax.random.normal(ks[5], (hc,))).astype(jnp.float32) * scale,
        "wk": w(ks[6], (hc, dim)),
        "wv": w(ks[7], (hc, dim)),
        "wg": w(ks[8], (hc, dim)),
        "bg": jnp.ones((hc,), jnp.float32),
        "wo": w(ks[9], (dim, hc)),
        "bo": jnp.zeros((dim,), jnp.float32),
        # proj_pair_bias: LayerNorm(c_pair) + LinearNoBias(c_pair, H)
        "pb_ln_w": jnp.ones((c_pair,), jnp.float32),
        "pb_ln_b": jnp.zeros((c_pair,), jnp.float32),
        "pb_w": w(ks[10], (no_heads, c_pair)),
    }
    return p


# ----------------------------------------------------------------------------
# Full forward pass (AdaLN + biased MHA + gating), attention core in Pallas
# ----------------------------------------------------------------------------
def attention_pair_bias_forward(params, single_repr, single_proj, pair_repr,
                                mask=None, betas=None, *, dim, no_heads,
                                inf=1e8, use_pallas=True):
    B, S, N, D = single_repr.shape
    H = no_heads
    C = dim // no_heads

    # ---- input_proj: AdaLN(single_repr, single_proj) ----
    a_n = layer_norm(single_repr)                                      # no affine
    s_n = layer_norm(single_proj, weight=params["adaln_s_ln_w"])       # scale only
    a = (jax.nn.sigmoid(s_n @ params["adaln_gate_w"].T) * a_n
         + s_n @ params["adaln_skip_w"].T)

    # ---- _prep_biases ----
    if mask is None:
        mask_e = jnp.ones(single_repr.shape[:-3] + (S, N), single_repr.dtype)
    else:
        mask_e = jnp.broadcast_to(mask[..., None, :],
                                  mask.shape[:-1] + (S, N)).astype(single_repr.dtype)
    mask_bias = (inf * (mask_e - 1.0))[..., None, :]                   # [B, S, 1, N]

    pb = layer_norm(pair_repr, params["pb_ln_w"], params["pb_ln_b"])
    pb = pb @ params["pb_w"].T                                         # [B, N, N, H]
    pair_bias = jnp.transpose(pb, (0, 3, 1, 2))                        # [B, H, N, N]
    if betas is not None:
        pair_bias = pair_bias + betas[..., None, :, :]

    # ---- attention projections (scale pre-folded into wq/bq at init) ----
    # bf16 MXU feeds; softmax math stays f32 inside the kernel.
    q = (a @ params["wq"].T + params["bq"]).astype(jnp.bfloat16)       # [B,S,N,dim]
    k = (a @ params["wk"].T).astype(jnp.bfloat16)
    v = (a @ params["wv"].T).astype(jnp.bfloat16)

    if use_pallas:
        o = pair_bias_attention(q, k, v,
                                mask_bias.astype(jnp.float32),
                                pair_bias.astype(jnp.float32),
                                num_heads=H)                           # [B,S,N,dim] f32
    else:
        # pure-JAX reference mirroring the kernel numerics (bf16 MXU feeds)
        qh = q.reshape(B, S, N, H, C)
        kh = k.reshape(B, S, N, H, C)
        vh = v.reshape(B, S, N, H, C)
        logits = jnp.einsum("bsqhc,bskhc->bshqk", qh, kh,
                            preferred_element_type=jnp.float32)
        logits = logits + mask_bias[:, :, None, :, :] + pair_bias[:, None]
        probs = jax.nn.softmax(logits, axis=-1)
        o = jnp.einsum("bshqk,bskhc->bsqhc", probs.astype(jnp.bfloat16), vh,
                       preferred_element_type=jnp.float32)
        o = o.reshape(B, S, N, H * C)

    # ---- gating + output projection (OpenFold Attention wrap-up) ----
    g = jax.nn.sigmoid(a @ params["wg"].T + params["bg"])              # [B,S,N,dim]
    o = o.astype(jnp.float32) * g                                      # head layout matches kernel
    out = o @ params["wo"].T + params["bo"]                            # [B,S,N,dim]

    # ---- final masking + input-gating with single_proj ----
    if mask is not None:
        out = out * mask[..., None, :, None]                           # [B,1,N,1]
    out = jax.nn.sigmoid(single_proj @ params["out_gate_w"].T
                         + params["out_gate_b"]) * out
    # TODO(synk): dropout on attention weights is a no-op here (p=0.0 default).
    return out


# ----------------------------------------------------------------------------
# Main
# ----------------------------------------------------------------------------
if __name__ == "__main__":
    dim, c_pair, no_heads = 32, 16, 8
    B, S, N = 2, 2, 8

    key = jax.random.PRNGKey(0)
    kp, k1, k2, k3 = jax.random.split(key, 4)

    params = init_params(kp, dim, c_pair, no_heads)

    single_repr = jax.random.normal(k1, (B, S, N, dim), jnp.float32)
    single_proj = jax.random.normal(k2, (B, S, N, dim), jnp.float32)
    pair_repr = jax.random.normal(k3, (B, N, N, c_pair), jnp.float32)
    mask = jnp.ones((B, N), jnp.float32).at[1, -1].set(0.0)  # exercise masking

    fwd = functools.partial(attention_pair_bias_forward, params,
                            single_repr, single_proj, pair_repr, mask,
                            dim=dim, no_heads=no_heads)

    out_pallas = jax.block_until_ready(fwd(use_pallas=True))
    out_ref = jax.block_until_ready(fwd(use_pallas=False))

    assert out_pallas.shape == (B, S, N, dim)
    max_err = float(jnp.max(jnp.abs(out_pallas - out_ref)))
    assert jnp.allclose(out_pallas, out_ref, atol=2e-2, rtol=2e-2), max_err
    print("KERNEL_OK")
</pallas_src>

<mosaic_0001>
module attributes {stable_mosaic.version = 11 : i64} {
  func.func @_attn_kernel(%arg0: i32, %arg1: i32, %arg2: memref<1x1x8x32xbf16, #tpu.memory_space<vmem>>, %arg3: memref<1x1x8x32xbf16, #tpu.memory_space<vmem>>, %arg4: memref<1x1x8x32xbf16, #tpu.memory_space<vmem>>, %arg5: memref<1x1x1x8xf32, #tpu.memory_space<vmem>>, %arg6: memref<1x8x8x8xf32, #tpu.memory_space<vmem>>, %arg7: memref<1x1x8x32xf32, #tpu.memory_space<vmem>>) attributes {dimension_semantics = [#tpu.dimension_semantics<parallel>, #tpu.dimension_semantics<parallel>], iteration_bounds = array<i64: 2, 2>, scalar_prefetch = 0 : i64, scratch_operands = 0 : i64, tpu.core_type = #tpu.core_type<tc>, window_params = [{transform_indices = @transform_0, window_bounds = array<i64: 1, 1, 8, 32>}, {transform_indices = @transform_1, window_bounds = array<i64: 1, 1, 8, 32>}, {transform_indices = @transform_2, window_bounds = array<i64: 1, 1, 8, 32>}, {transform_indices = @transform_3, window_bounds = array<i64: 1, 1, 1, 8>}, {transform_indices = @transform_4, window_bounds = array<i64: 1, 8, 8, 8>}, {transform_indices = @transform_5, window_bounds = array<i64: 1, 1, 8, 32>}]} {
    %c0 = arith.constant 0 : index
    %c0_0 = arith.constant 0 : index
    %c0_1 = arith.constant 0 : index
    %c0_2 = arith.constant 0 : index
    %0 = vector.load %arg5[%c0, %c0_0, %c0_1, %c0_2] : memref<1x1x1x8xf32, #tpu.memory_space<vmem>>, vector<1x1x1x8xf32>
    %1 = vector.shape_cast %0 : vector<1x1x1x8xf32> to vector<1x8xf32>
    %c0_3 = arith.constant 0 : index
    %c0_4 = arith.constant 0 : index
    %c0_5 = arith.constant 0 : index
    %c0_6 = arith.constant 0 : index
    %2 = vector.load %arg2[%c0_3, %c0_4, %c0_5, %c0_6] : memref<1x1x8x32xbf16, #tpu.memory_space<vmem>>, vector<1x1x8x4xbf16>
    %3 = vector.shape_cast %2 : vector<1x1x8x4xbf16> to vector<8x4xbf16>
    %c0_7 = arith.constant 0 : index
    %c0_8 = arith.constant 0 : index
    %c0_9 = arith.constant 0 : index
    %c0_10 = arith.constant 0 : index
    %4 = vector.load %arg3[%c0_7, %c0_8, %c0_9, %c0_10] : memref<1x1x8x32xbf16, #tpu.memory_space<vmem>>, vector<1x1x8x4xbf16>
    %5 = vector.shape_cast %4 : vector<1x1x8x4xbf16> to vector<8x4xbf16>
    %c0_11 = arith.constant 0 : index
    %c0_12 = arith.constant 0 : index
    %c0_13 = arith.constant 0 : index
    %c0_14 = arith.constant 0 : index
    %6 = vector.load %arg4[%c0_11, %c0_12, %c0_13, %c0_14] : memref<1x1x8x32xbf16, #tpu.memory_space<vmem>>, vector<1x1x8x4xbf16>
    %7 = vector.shape_cast %6 : vector<1x1x8x4xbf16> to vector<8x4xbf16>
    %cst = arith.constant dense<0.000000e+00> : vector<8x8xf32>
    %8 = tpu.matmul %3, %5, %cst {dimension_numbers = #tpu.dot_dimension_numbers<[1], [1], [0], [0], [0, 0, 1, 0], [], []>} : vector<8x4xbf16>, vector<8x4xbf16>, vector<8x8xf32> -> vector<8x8xf32>
    %9 = vector.broadcast %1 : vector<1x8xf32> to vector<8x8xf32>
    %10 = arith.addf %8, %9 : vector<8x8xf32>
    %c0_15 = arith.constant 0 : index
    %c0_16 = arith.constant 0 : index
    %c0_17 = arith.constant 0 : index
    %c0_18 = arith.constant 0 : index
    %11 = vector.load %arg6[%c0_15, %c0_16, %c0_17, %c0_18] : memref<1x8x8x8xf32, #tpu.memory_space<vmem>>, vector<1x1x8x8xf32>
    %12 = vector.shape_cast %11 : vector<1x1x8x8xf32> to vector<8x8xf32>
    %13 = arith.addf %10, %12 : vector<8x8xf32>
    %cst_19 = arith.constant dense<0xFF800000> : vector<8xf32>
    %14 = vector.multi_reduction <maximumf>, %13, %cst_19 [1] : vector<8x8xf32> to vector<8xf32>
    %15 = vector.shape_cast %14 : vector<8xf32> to vector<8x1xf32>
    %16 = vector.broadcast %15 : vector<8x1xf32> to vector<8x8xf32>
    %17 = arith.subf %13, %16 : vector<8x8xf32>
    %18 = math.exp %17 : vector<8x8xf32>
    %cst_20 = arith.constant dense<0.000000e+00> : vector<8xf32>
    %19 = vector.multi_reduction <add>, %18, %cst_20 [1] : vector<8x8xf32> to vector<8xf32>
    %20 = vector.shape_cast %19 : vector<8xf32> to vector<8x1xf32>
    %21 = tpu.reciprocal %20 {approx = true} : vector<8x1xf32> -> vector<8x1xf32>
    %22 = vector.broadcast %21 : vector<8x1xf32> to vector<8x8xf32>
    %23 = arith.mulf %18, %22 : vector<8x8xf32>
    %24 = arith.truncf %23 : vector<8x8xf32> to vector<8x8xbf16>
    %cst_21 = arith.constant dense<0.000000e+00> : vector<8x4xf32>
    %25 = tpu.matmul %24, %7, %cst_21 {dimension_numbers = #tpu.dot_dimension_numbers<[1], [0], [0], [1], [0, 0, 1, 1], [], []>} : vector<8x8xbf16>, vector<8x4xbf16>, vector<8x4xf32> -> vector<8x4xf32>
    %c0_22 = arith.constant 0 : index
    %c0_23 = arith.constant 0 : index
    %c0_24 = arith.constant 0 : index
    %c0_25 = arith.constant 0 : index
    %26 = vector.load %arg7[%c0_22, %c0_23, %c0_24, %c0_25] : memref<1x1x8x32xf32, #tpu.memory_space<vmem>>, vector<1x1x8x4xf32>
    %27 = vector.shape_cast %26 : vector<1x1x8x4xf32> to vector<8x4xf32>
    %28 = vector.shape_cast %25 : vector<8x4xf32> to vector<1x1x8x4xf32>
    tpu.vector_store %arg7[%c0_22, %c0_23, %c0_24, %c0_25], %28 {strides = array<i32>} : memref<1x1x8x32xf32, #tpu.memory_space<vmem>>, vector<1x1x8x4xf32>,
    %c0_26 = arith.constant 0 : index
    %c0_27 = arith.constant 0 : index
    %c0_28 = arith.constant 0 : index
    %c4 = arith.constant 4 : index
    %29 = vector.load %arg2[%c0_26, %c0_27, %c0_28, %c4] : memref<1x1x8x32xbf16, #tpu.memory_space<vmem>>, vector<1x1x8x4xbf16>
    %30 = vector.shape_cast %29 : vector<1x1x8x4xbf16> to vector<8x4xbf16>
    %c0_29 = arith.constant 0 : index
    %c0_30 = arith.constant 0 : index
    %c0_31 = arith.constant 0 : index
    %c4_32 = arith.constant 4 : index
    %31 = vector.load %arg3[%c0_29, %c0_30, %c0_31, %c4_32] : memref<1x1x8x32xbf16, #tpu.memory_space<vmem>>, vector<1x1x8x4xbf16>
    %32 = vector.shape_cast %31 : vector<1x1x8x4xbf16> to vector<8x4xbf16>
    %c0_33 = arith.constant 0 : index
    %c0_34 = arith.constant 0 : index
    %c0_35 = arith.constant 0 : index
    %c4_36 = arith.constant 4 : index
    %33 = vector.load %arg4[%c0_33, %c0_34, %c0_35, %c4_36] : memref<1x1x8x32xbf16, #tpu.memory_space<vmem>>, vector<1x1x8x4xbf16>
    %34 = vector.shape_cast %33 : vector<1x1x8x4xbf16> to vector<8x4xbf16>
    %cst_37 = arith.constant dense<0.000000e+00> : vector<8x8xf32>
    %35 = tpu.matmul %30, %32, %cst_37 {dimension_numbers = #tpu.dot_dimension_numbers<[1], [1], [0], [0], [0, 0, 1, 0], [], []>} : vector<8x4xbf16>, vector<8x4xbf16>, vector<8x8xf32> -> vector<8x8xf32>
    %36 = vector.broadcast %1 : vector<1x8xf32> to vector<8x8xf32>
    %37 = arith.addf %35, %36 : vector<8x8xf32>
    %c0_38 = arith.constant 0 : index
    %c1 = arith.constant 1 : index
    %c0_39 = arith.constant 0 : index
    %c0_40 = arith.constant 0 : index
    %38 = vector.load %arg6[%c0_38, %c1, %c0_39, %c0_40] : memref<1x8x8x8xf32, #tpu.memory_space<vmem>>, vector<1x1x8x8xf32>
    %39 = vector.shape_cast %38 : vector<1x1x8x8xf32> to vector<8x8xf32>
    %40 = arith.addf %37, %39 : vector<8x8xf32>
    %cst_41 = arith.constant dense<0xFF800000> : vector<8xf32>
    %41 = vector.multi_reduction <maximumf>, %40, %cst_41 [1] : vector<8x8xf32> to vector<8xf32>
    %42 = vector.shape_cast %41 : vector<8xf32> to vector<8x1xf32>
    %43 = vector.broadcast %42 : vector<8x1xf32> to vector<8x8xf32>
    %44 = arith.subf %40, %43 : vector<8x8xf32>
    %45 = math.exp %44 : vector<8x8xf32>
    %cst_42 = arith.constant dense<0.000000e+00> : vector<8xf32>
    %46 = vector.multi_reduction <add>, %45, %cst_42 [1] : vector<8x8xf32> to vector<8xf32>
    %47 = vector.shape_cast %46 : vector<8xf32> to vector<8x1xf32>
    %48 = tpu.reciprocal %47 {approx = true} : vector<8x1xf32> -> vector<8x1xf32>
    %49 = vector.broadcast %48 : vector<8x1xf32> to vector<8x8xf32>
    %50 = arith.mulf %45, %49 : vector<8x8xf32>
    %51 = arith.truncf %50 : vector<8x8xf32> to vector<8x8xbf16>
    %cst_43 = arith.constant dense<0.000000e+00> : vector<8x4xf32>
    %52 = tpu.matmul %51, %34, %cst_43 {dimension_numbers = #tpu.dot_dimension_numbers<[1], [0], [0], [1], [0, 0, 1, 1], [], []>} : vector<8x8xbf16>, vector<8x4xbf16>, vector<8x4xf32> -> vector<8x4xf32>
    %c0_44 = arith.constant 0 : index
    %c0_45 = arith.constant 0 : index
    %c0_46 = arith.constant 0 : index
    %c4_47 = arith.constant 4 : index
    %53 = vector.load %arg7[%c0_44, %c0_45, %c0_46, %c4_47] : memref<1x1x8x32xf32, #tpu.memory_space<vmem>>, vector<1x1x8x4xf32>
    %54 = vector.shape_cast %53 : vector<1x1x8x4xf32> to vector<8x4xf32>
    %55 = vector.shape_cast %52 : vector<8x4xf32> to vector<1x1x8x4xf32>
    tpu.vector_store %arg7[%c0_44, %c0_45, %c0_46, %c4_47], %55 {strides = array<i32>} : memref<1x1x8x32xf32, #tpu.memory_space<vmem>>, vector<1x1x8x4xf32>,
    %c0_48 = arith.constant 0 : index
    %c0_49 = arith.constant 0 : index
    %c0_50 = arith.constant 0 : index
    %c8 = arith.constant 8 : index
    %56 = vector.load %arg2[%c0_48, %c0_49, %c0_50, %c8] : memref<1x1x8x32xbf16, #tpu.memory_space<vmem>>, vector<1x1x8x4xbf16>
    %57 = vector.shape_cast %56 : vector<1x1x8x4xbf16> to vector<8x4xbf16>
    %c0_51 = arith.constant 0 : index
    %c0_52 = arith.constant 0 : index
    %c0_53 = arith.constant 0 : index
    %c8_54 = arith.constant 8 : index
    %58 = vector.load %arg3[%c0_51, %c0_52, %c0_53, %c8_54] : memref<1x1x8x32xbf16, #tpu.memory_space<vmem>>, vector<1x1x8x4xbf16>
    %59 = vector.shape_cast %58 : vector<1x1x8x4xbf16> to vector<8x4xbf16>
    %c0_55 = arith.constant 0 : index
    %c0_56 = arith.constant 0 : index
    %c0_57 = arith.constant 0 : index
    %c8_58 = arith.constant 8 : index
    %60 = vector.load %arg4[%c0_55, %c0_56, %c0_57, %c8_58] : memref<1x1x8x32xbf16, #tpu.memory_space<vmem>>, vector<1x1x8x4xbf16>
    %61 = vector.shape_cast %60 : vector<1x1x8x4xbf16> to vector<8x4xbf16>
    %cst_59 = arith.constant dense<0.000000e+00> : vector<8x8xf32>
    %62 = tpu.matmul %57, %59, %cst_59 {dimension_numbers = #tpu.dot_dimension_numbers<[1], [1], [0], [0], [0, 0, 1, 0], [], []>} : vector<8x4xbf16>, vector<8x4xbf16>, vector<8x8xf32> -> vector<8x8xf32>
    %63 = vector.broadcast %1 : vector<1x8xf32> to vector<8x8xf32>
    %64 = arith.addf %62, %63 : vector<8x8xf32>
    %c0_60 = arith.constant 0 : index
    %c2 = arith.constant 2 : index
    %c0_61 = arith.constant 0 : index
    %c0_62 = arith.constant 0 : index
    %65 = vector.load %arg6[%c0_60, %c2, %c0_61, %c0_62] : memref<1x8x8x8xf32, #tpu.memory_space<vmem>>, vector<1x1x8x8xf32>
    %66 = vector.shape_cast %65 : vector<1x1x8x8xf32> to vector<8x8xf32>
    %67 = arith.addf %64, %66 : vector<8x8xf32>
    %cst_63 = arith.constant dense<0xFF800000> : vector<8xf32>
    %68 = vector.multi_reduction <maximumf>, %67, %cst_63 [1] : vector<8x8xf32> to vector<8xf32>
    %69 = vector.shape_cast %68 : vector<8xf32> to vector<8x1xf32>
    %70 = vector.broadcast %69 : vector<8x1xf32> to vector<8x8xf32>
    %71 = arith.subf %67, %70 : vector<8x8xf32>
    %72 = math.exp %71 : vector<8x8xf32>
    %cst_64 = arith.constant dense<0.000000e+00> : vector<8xf32>
    %73 = vector.multi_reduction <add>, %72, %cst_64 [1] : vector<8x8xf32> to vector<8xf32>
    %74 = vector.shape_cast %73 : vector<8xf32> to vector<8x1xf32>
    %75 = tpu.reciprocal %74 {approx = true} : vector<8x1xf32> -> vector<8x1xf32>
    %76 = vector.broadcast %75 : vector<8x1xf32> to vector<8x8xf32>
    %77 = arith.mulf %72, %76 : vector<8x8xf32>
    %78 = arith.truncf %77 : vector<8x8xf32> to vector<8x8xbf16>
    %cst_65 = arith.constant dense<0.000000e+00> : vector<8x4xf32>
    %79 = tpu.matmul %78, %61, %cst_65 {dimension_numbers = #tpu.dot_dimension_numbers<[1], [0], [0], [1], [0, 0, 1, 1], [], []>} : vector<8x8xbf16>, vector<8x4xbf16>, vector<8x4xf32> -> vector<8x4xf32>
    %c0_66 = arith.constant 0 : index
    %c0_67 = arith.constant 0 : index
    %c0_68 = arith.constant 0 : index
    %c8_69 = arith.constant 8 : index
    %80 = vector.load %arg7[%c0_66, %c0_67, %c0_68, %c8_69] : memref<1x1x8x32xf32, #tpu.memory_space<vmem>>, vector<1x1x8x4xf32>
    %81 = vector.shape_cast %80 : vector<1x1x8x4xf32> to vector<8x4xf32>
    %82 = vector.shape_cast %79 : vector<8x4xf32> to vector<1x1x8x4xf32>
    tpu.vector_store %arg7[%c0_66, %c0_67, %c0_68, %c8_69], %82 {strides = array<i32>} : memref<1x1x8x32xf32, #tpu.memory_space<vmem>>, vector<1x1x8x4xf32>,
    %c0_70 = arith.constant 0 : index
    %c0_71 = arith.constant 0 : index
    %c0_72 = arith.constant 0 : index
    %c12 = arith.constant 12 : index
    %83 = vector.load %arg2[%c0_70, %c0_71, %c0_72, %c12] : memref<1x1x8x32xbf16, #tpu.memory_space<vmem>>, vector<1x1x8x4xbf16>
    %84 = vector.shape_cast %83 : vector<1x1x8x4xbf16> to vector<8x4xbf16>
    %c0_73 = arith.constant 0 : index
    %c0_74 = arith.constant 0 : index
    %c0_75 = arith.constant 0 : index
    %c12_76 = arith.constant 12 : index
    %85 = vector.load %arg3[%c0_73, %c0_74, %c0_75, %c12_76] : memref<1x1x8x32xbf16, #tpu.memory_space<vmem>>, vector<1x1x8x4xbf16>
    %86 = vector.shape_cast %85 : vector<1x1x8x4xbf16> to vector<8x4xbf16>
    %c0_77 = arith.constant 0 : index
    %c0_78 = arith.constant 0 : index
    %c0_79 = arith.constant 0 : index
    %c12_80 = arith.constant 12 : index
    %87 = vector.load %arg4[%c0_77, %c0_78, %c0_79, %c12_80] : memref<1x1x8x32xbf16, #tpu.memory_space<vmem>>, vector<1x1x8x4xbf16>
    %88 = vector.shape_cast %87 : vector<1x1x8x4xbf16> to vector<8x4xbf16>
    %cst_81 = arith.constant dense<0.000000e+00> : vector<8x8xf32>
    %89 = tpu.matmul %84, %86, %cst_81 {dimension_numbers = #tpu.dot_dimension_numbers<[1], [1], [0], [0], [0, 0, 1, 0], [], []>} : vector<8x4xbf16>, vector<8x4xbf16>, vector<8x8xf32> -> vector<8x8xf32>
    %90 = vector.broadcast %1 : vector<1x8xf32> to vector<8x8xf32>
    %91 = arith.addf %89, %90 : vector<8x8xf32>
    %c0_82 = arith.constant 0 : index
    %c3 = arith.constant 3 : index
    %c0_83 = arith.constant 0 : index
    %c0_84 = arith.constant 0 : index
    %92 = vector.load %arg6[%c0_82, %c3, %c0_83, %c0_84] : memref<1x8x8x8xf32, #tpu.memory_space<vmem>>, vector<1x1x8x8xf32>
    %93 = vector.shape_cast %92 : vector<1x1x8x8xf32> to vector<8x8xf32>
    %94 = arith.addf %91, %93 : vector<8x8xf32>
    %cst_85 = arith.constant dense<0xFF800000> : vector<8xf32>
    %95 = vector.multi_reduction <maximumf>, %94, %cst_85 [1] : vector<8x8xf32> to vector<8xf32>
    %96 = vector.shape_cast %95 : vector<8xf32> to vector<8x1xf32>
    %97 = vector.broadcast %96 : vector<8x1xf32> to vector<8x8xf32>
    %98 = arith.subf %94, %97 : vector<8x8xf32>
    %99 = math.exp %98 : vector<8x8xf32>
    %cst_86 = arith.constant dense<0.000000e+00> : vector<8xf32>
    %100 = vector.multi_reduction <add>, %99, %cst_86 [1] : vector<8x8xf32> to vector<8xf32>
    %101 = vector.shape_cast %100 : vector<8xf32> to vector<8x1xf32>
    %102 = tpu.reciprocal %101 {approx = true} : vector<8x1xf32> -> vector<8x1xf32>
    %103 = vector.broadcast %102 : vector<8x1xf32> to vector<8x8xf32>
    %104 = arith.mulf %99, %103 : vector<8x8xf32>
    %105 = arith.truncf %104 : vector<8x8xf32> to vector<8x8xbf16>
    %cst_87 = arith.constant dense<0.000000e+00> : vector<8x4xf32>
    %106 = tpu.matmul %105, %88, %cst_87 {dimension_numbers = #tpu.dot_dimension_numbers<[1], [0], [0], [1], [0, 0, 1, 1], [], []>} : vector<8x8xbf16>, vector<8x4xbf16>, vector<8x4xf32> -> vector<8x4xf32>
    %c0_88 = arith.constant 0 : index
    %c0_89 = arith.constant 0 : index
    %c0_90 = arith.constant 0 : index
    %c12_91 = arith.constant 12 : index
    %107 = vector.load %arg7[%c0_88, %c0_89, %c0_90, %c12_91] : memref<1x1x8x32xf32, #tpu.memory_space<vmem>>, vector<1x1x8x4xf32>
    %108 = vector.shape_cast %107 : vector<1x1x8x4xf32> to vector<8x4xf32>
    %109 = vector.shape_cast %106 : vector<8x4xf32> to vector<1x1x8x4xf32>
    tpu.vector_store %arg7[%c0_88, %c0_89, %c0_90, %c12_91], %109 {strides = array<i32>} : memref<1x1x8x32xf32, #tpu.memory_space<vmem>>, vector<1x1x8x4xf32>,
    %c0_92 = arith.constant 0 : index
    %c0_93 = arith.constant 0 : index
    %c0_94 = arith.constant 0 : index
    %c16 = arith.constant 16 : index
    %110 = vector.load %arg2[%c0_92, %c0_93, %c0_94, %c16] : memref<1x1x8x32xbf16, #tpu.memory_space<vmem>>, vector<1x1x8x4xbf16>
    %111 = vector.shape_cast %110 : vector<1x1x8x4xbf16> to vector<8x4xbf16>
    %c0_95 = arith.constant 0 : index
    %c0_96 = arith.constant 0 : index
    %c0_97 = arith.constant 0 : index
    %c16_98 = arith.constant 16 : index
    %112 = vector.load %arg3[%c0_95, %c0_96, %c0_97, %c16_98] : memref<1x1x8x32xbf16, #tpu.memory_space<vmem>>, vector<1x1x8x4xbf16>
    %113 = vector.shape_cast %112 : vector<1x1x8x4xbf16> to vector<8x4xbf16>
    %c0_99 = arith.constant 0 : index
    %c0_100 = arith.constant 0 : index
    %c0_101 = arith.constant 0 : index
    %c16_102 = arith.constant 16 : index
    %114 = vector.load %arg4[%c0_99, %c0_100, %c0_101, %c16_102] : memref<1x1x8x32xbf16, #tpu.memory_space<vmem>>, vector<1x1x8x4xbf16>
    %115 = vector.shape_cast %114 : vector<1x1x8x4xbf16> to vector<8x4xbf16>
    %cst_103 = arith.constant dense<0.000000e+00> : vector<8x8xf32>
    %116 = tpu.matmul %111, %113, %cst_103 {dimension_numbers = #tpu.dot_dimension_numbers<[1], [1], [0], [0], [0, 0, 1, 0], [], []>} : vector<8x4xbf16>, vector<8x4xbf16>, vector<8x8xf32> -> vector<8x8xf32>
    %117 = vector.broadcast %1 : vector<1x8xf32> to vector<8x8xf32>
    %118 = arith.addf %116, %117 : vector<8x8xf32>
    %c0_104 = arith.constant 0 : index
    %c4_105 = arith.constant 4 : index
    %c0_106 = arith.constant 0 : index
    %c0_107 = arith.constant 0 : index
    %119 = vector.load %arg6[%c0_104, %c4_105, %c0_106, %c0_107] : memref<1x8x8x8xf32, #tpu.memory_space<vmem>>, vector<1x1x8x8xf32>
    %120 = vector.shape_cast %119 : vector<1x1x8x8xf32> to vector<8x8xf32>
    %121 = arith.addf %118, %120 : vector<8x8xf32>
    %cst_108 = arith.constant dense<0xFF800000> : vector<8xf32>
    %122 = vector.multi_reduction <maximumf>, %121, %cst_108 [1] : vector<8x8xf32> to vector<8xf32>
    %123 = vector.shape_cast %122 : vector<8xf32> to vector<8x1xf32>
    %124 = vector.broadcast %123 : vector<8x1xf32> to vector<8x8xf32>
    %125 = arith.subf %121, %124 : vector<8x8xf32>
    %126 = math.exp %125 : vector<8x8xf32>
    %cst_109 = arith.constant dense<0.000000e+00> : vector<8xf32>
    %127 = vector.multi_reduction <add>, %126, %cst_109 [1] : vector<8x8xf32> to vector<8xf32>
    %128 = vector.shape_cast %127 : vector<8xf32> to vector<8x1xf32>
    %129 = tpu.reciprocal %128 {approx = true} : vector<8x1xf32> -> vector<8x1xf32>
    %130 = vector.broadcast %129 : vector<8x1xf32> to vector<8x8xf32>
    %131 = arith.mulf %126, %130 : vector<8x8xf32>
    %132 = arith.truncf %131 : vector<8x8xf32> to vector<8x8xbf16>
    %cst_110 = arith.constant dense<0.000000e+00> : vector<8x4xf32>
    %133 = tpu.matmul %132, %115, %cst_110 {dimension_numbers = #tpu.dot_dimension_numbers<[1], [0], [0], [1], [0, 0, 1, 1], [], []>} : vector<8x8xbf16>, vector<8x4xbf16>, vector<8x4xf32> -> vector<8x4xf32>
    %c0_111 = arith.constant 0 : index
    %c0_112 = arith.constant 0 : index
    %c0_113 = arith.constant 0 : index
    %c16_114 = arith.constant 16 : index
    %134 = vector.load %arg7[%c0_111, %c0_112, %c0_113, %c16_114] : memref<1x1x8x32xf32, #tpu.memory_space<vmem>>, vector<1x1x8x4xf32>
    %135 = vector.shape_cast %134 : vector<1x1x8x4xf32> to vector<8x4xf32>
    %136 = vector.shape_cast %133 : vector<8x4xf32> to vector<1x1x8x4xf32>
    tpu.vector_store %arg7[%c0_111, %c0_112, %c0_113, %c16_114], %136 {strides = array<i32>} : memref<1x1x8x32xf32, #tpu.memory_space<vmem>>, vector<1x1x8x4xf32>,
    %c0_115 = arith.constant 0 : index
    %c0_116 = arith.constant 0 : index
    %c0_117 = arith.constant 0 : index
    %c20 = arith.constant 20 : index
    %137 = vector.load %arg2[%c0_115, %c0_116, %c0_117, %c20] : memref<1x1x8x32xbf16, #tpu.memory_space<vmem>>, vector<1x1x8x4xbf16>
    %138 = vector.shape_cast %137 : vector<1x1x8x4xbf16> to vector<8x4xbf16>
    %c0_118 = arith.constant 0 : index
    %c0_119 = arith.constant 0 : index
    %c0_120 = arith.constant 0 : index
    %c20_121 = arith.constant 20 : index
    %139 = vector.load %arg3[%c0_118, %c0_119, %c0_120, %c20_121] : memref<1x1x8x32xbf16, #tpu.memory_space<vmem>>, vector<1x1x8x4xbf16>
    %140 = vector.shape_cast %139 : vector<1x1x8x4xbf16> to vector<8x4xbf16>
    %c0_122 = arith.constant 0 : index
    %c0_123 = arith.constant 0 : index
    %c0_124 = arith.constant 0 : index
    %c20_125 = arith.constant 20 : index
    %141 = vector.load %arg4[%c0_122, %c0_123, %c0_124, %c20_125] : memref<1x1x8x32xbf16, #tpu.memory_space<vmem>>, vector<1x1x8x4xbf16>
    %142 = vector.shape_cast %141 : vector<1x1x8x4xbf16> to vector<8x4xbf16>
    %cst_126 = arith.constant dense<0.000000e+00> : vector<8x8xf32>
    %143 = tpu.matmul %138, %140, %cst_126 {dimension_numbers = #tpu.dot_dimension_numbers<[1], [1], [0], [0], [0, 0, 1, 0], [], []>} : vector<8x4xbf16>, vector<8x4xbf16>, vector<8x8xf32> -> vector<8x8xf32>
    %144 = vector.broadcast %1 : vector<1x8xf32> to vector<8x8xf32>
    %145 = arith.addf %143, %144 : vector<8x8xf32>
    %c0_127 = arith.constant 0 : index
    %c5 = arith.constant 5 : index
    %c0_128 = arith.constant 0 : index
    %c0_129 = arith.constant 0 : index
    %146 = vector.load %arg6[%c0_127, %c5, %c0_128, %c0_129] : memref<1x8x8x8xf32, #tpu.memory_space<vmem>>, vector<1x1x8x8xf32>
    %147 = vector.shape_cast %146 : vector<1x1x8x8xf32> to vector<8x8xf32>
    %148 = arith.addf %145, %147 : vector<8x8xf32>
    %cst_130 = arith.constant dense<0xFF800000> : vector<8xf32>
    %149 = vector.multi_reduction <maximumf>, %148, %cst_130 [1] : vector<8x8xf32> to vector<8xf32>
    %150 = vector.shape_cast %149 : vector<8xf32> to vector<8x1xf32>
    %151 = vector.broadcast %150 : vector<8x1xf32> to vector<8x8xf32>
    %152 = arith.subf %148, %151 : vector<8x8xf32>
    %153 = math.exp %152 : vector<8x8xf32>
    %cst_131 = arith.constant dense<0.000000e+00> : vector<8xf32>
    %154 = vector.multi_reduction <add>, %153, %cst_131 [1] : vector<8x8xf32> to vector<8xf32>
    %155 = vector.shape_cast %154 : vector<8xf32> to vector<8x1xf32>
    %156 = tpu.reciprocal %155 {approx = true} : vector<8x1xf32> -> vector<8x1xf32>
    %157 = vector.broadcast %156 : vector<8x1xf32> to vector<8x8xf32>
    %158 = arith.mulf %153, %157 : vector<8x8xf32>
    %159 = arith.truncf %158 : vector<8x8xf32> to vector<8x8xbf16>
    %cst_132 = arith.constant dense<0.000000e+00> : vector<8x4xf32>
    %160 = tpu.matmul %159, %142, %cst_132 {dimension_numbers = #tpu.dot_dimension_numbers<[1], [0], [0], [1], [0, 0, 1, 1], [], []>} : vector<8x8xbf16>, vector<8x4xbf16>, vector<8x4xf32> -> vector<8x4xf32>
    %c0_133 = arith.constant 0 : index
    %c0_134 = arith.constant 0 : index
    %c0_135 = arith.constant 0 : index
    %c20_136 = arith.constant 20 : index
    %161 = vector.load %arg7[%c0_133, %c0_134, %c0_135, %c20_136] : memref<1x1x8x32xf32, #tpu.memory_space<vmem>>, vector<1x1x8x4xf32>
    %162 = vector.shape_cast %161 : vector<1x1x8x4xf32> to vector<8x4xf32>
    %163 = vector.shape_cast %160 : vector<8x4xf32> to vector<1x1x8x4xf32>
    tpu.vector_store %arg7[%c0_133, %c0_134, %c0_135, %c20_136], %163 {strides = array<i32>} : memref<1x1x8x32xf32, #tpu.memory_space<vmem>>, vector<1x1x8x4xf32>,
    %c0_137 = arith.constant 0 : index
    %c0_138 = arith.constant 0 : index
    %c0_139 = arith.constant 0 : index
    %c24 = arith.constant 24 : index
    %164 = vector.load %arg2[%c0_137, %c0_138, %c0_139, %c24] : memref<1x1x8x32xbf16, #tpu.memory_space<vmem>>, vector<1x1x8x4xbf16>
    %165 = vector.shape_cast %164 : vector<1x1x8x4xbf16> to vector<8x4xbf16>
    %c0_140 = arith.constant 0 : index
    %c0_141 = arith.constant 0 : index
    %c0_142 = arith.constant 0 : index
    %c24_143 = arith.constant 24 : index
    %166 = vector.load %arg3[%c0_140, %c0_141, %c0_142, %c24_143] : memref<1x1x8x32xbf16, #tpu.memory_space<vmem>>, vector<1x1x8x4xbf16>
    %167 = vector.shape_cast %166 : vector<1x1x8x4xbf16> to vector<8x4xbf16>
    %c0_144 = arith.constant 0 : index
    %c0_145 = arith.constant 0 : index
    %c0_146 = arith.constant 0 : index
    %c24_147 = arith.constant 24 : index
    %168 = vector.load %arg4[%c0_144, %c0_145, %c0_146, %c24_147] : memref<1x1x8x32xbf16, #tpu.memory_space<vmem>>, vector<1x1x8x4xbf16>
    %169 = vector.shape_cast %168 : vector<1x1x8x4xbf16> to vector<8x4xbf16>
    %cst_148 = arith.constant dense<0.000000e+00> : vector<8x8xf32>
    %170 = tpu.matmul %165, %167, %cst_148 {dimension_numbers = #tpu.dot_dimension_numbers<[1], [1], [0], [0], [0, 0, 1, 0], [], []>} : vector<8x4xbf16>, vector<8x4xbf16>, vector<8x8xf32> -> vector<8x8xf32>
    %171 = vector.broadcast %1 : vector<1x8xf32> to vector<8x8xf32>
    %172 = arith.addf %170, %171 : vector<8x8xf32>
    %c0_149 = arith.constant 0 : index
    %c6 = arith.constant 6 : index
    %c0_150 = arith.constant 0 : index
    %c0_151 = arith.constant 0 : index
    %173 = vector.load %arg6[%c0_149, %c6, %c0_150, %c0_151] : memref<1x8x8x8xf32, #tpu.memory_space<vmem>>, vector<1x1x8x8xf32>
    %174 = vector.shape_cast %173 : vector<1x1x8x8xf32> to vector<8x8xf32>
    %175 = arith.addf %172, %174 : vector<8x8xf32>
    %cst_152 = arith.constant dense<0xFF800000> : vector<8xf32>
    %176 = vector.multi_reduction <maximumf>, %175, %cst_152 [1] : vector<8x8xf32> to vector<8xf32>
    %177 = vector.shape_cast %176 : vector<8xf32> to vector<8x1xf32>
    %178 = vector.broadcast %177 : vector<8x1xf32> to vector<8x8xf32>
    %179 = arith.subf %175, %178 : vector<8x8xf32>
    %180 = math.exp %179 : vector<8x8xf32>
    %cst_153 = arith.constant dense<0.000000e+00> : vector<8xf32>
    %181 = vector.multi_reduction <add>, %180, %cst_153 [1] : vector<8x8xf32> to vector<8xf32>
    %182 = vector.shape_cast %181 : vector<8xf32> to vector<8x1xf32>
    %183 = tpu.reciprocal %182 {approx = true} : vector<8x1xf32> -> vector<8x1xf32>
    %184 = vector.broadcast %183 : vector<8x1xf32> to vector<8x8xf32>
    %185 = arith.mulf %180, %184 : vector<8x8xf32>
    %186 = arith.truncf %185 : vector<8x8xf32> to vector<8x8xbf16>
    %cst_154 = arith.constant dense<0.000000e+00> : vector<8x4xf32>
    %187 = tpu.matmul %186, %169, %cst_154 {dimension_numbers = #tpu.dot_dimension_numbers<[1], [0], [0], [1], [0, 0, 1, 1], [], []>} : vector<8x8xbf16>, vector<8x4xbf16>, vector<8x4xf32> -> vector<8x4xf32>
    %c0_155 = arith.constant 0 : index
    %c0_156 = arith.constant 0 : index
    %c0_157 = arith.constant 0 : index
    %c24_158 = arith.constant 24 : index
    %188 = vector.load %arg7[%c0_155, %c0_156, %c0_157, %c24_158] : memref<1x1x8x32xf32, #tpu.memory_space<vmem>>, vector<1x1x8x4xf32>
    %189 = vector.shape_cast %188 : vector<1x1x8x4xf32> to vector<8x4xf32>
    %190 = vector.shape_cast %187 : vector<8x4xf32> to vector<1x1x8x4xf32>
    tpu.vector_store %arg7[%c0_155, %c0_156, %c0_157, %c24_158], %190 {strides = array<i32>} : memref<1x1x8x32xf32, #tpu.memory_space<vmem>>, vector<1x1x8x4xf32>,
    %c0_159 = arith.constant 0 : index
    %c0_160 = arith.constant 0 : index
    %c0_161 = arith.constant 0 : index
    %c28 = arith.constant 28 : index
    %191 = vector.load %arg2[%c0_159, %c0_160, %c0_161, %c28] : memref<1x1x8x32xbf16, #tpu.memory_space<vmem>>, vector<1x1x8x4xbf16>
    %192 = vector.shape_cast %191 : vector<1x1x8x4xbf16> to vector<8x4xbf16>
    %c0_162 = arith.constant 0 : index
    %c0_163 = arith.constant 0 : index
    %c0_164 = arith.constant 0 : index
    %c28_165 = arith.constant 28 : index
    %193 = vector.load %arg3[%c0_162, %c0_163, %c0_164, %c28_165] : memref<1x1x8x32xbf16, #tpu.memory_space<vmem>>, vector<1x1x8x4xbf16>
    %194 = vector.shape_cast %193 : vector<1x1x8x4xbf16> to vector<8x4xbf16>
    %c0_166 = arith.constant 0 : index
    %c0_167 = arith.constant 0 : index
    %c0_168 = arith.constant 0 : index
    %c28_169 = arith.constant 28 : index
    %195 = vector.load %arg4[%c0_166, %c0_167, %c0_168, %c28_169] : memref<1x1x8x32xbf16, #tpu.memory_space<vmem>>, vector<1x1x8x4xbf16>
    %196 = vector.shape_cast %195 : vector<1x1x8x4xbf16> to vector<8x4xbf16>
    %cst_170 = arith.constant dense<0.000000e+00> : vector<8x8xf32>
    %197 = tpu.matmul %192, %194, %cst_170 {dimension_numbers = #tpu.dot_dimension_numbers<[1], [1], [0], [0], [0, 0, 1, 0], [], []>} : vector<8x4xbf16>, vector<8x4xbf16>, vector<8x8xf32> -> vector<8x8xf32>
    %198 = vector.broadcast %1 : vector<1x8xf32> to vector<8x8xf32>
    %199 = arith.addf %197, %198 : vector<8x8xf32>
    %c0_171 = arith.constant 0 : index
    %c7 = arith.constant 7 : index
    %c0_172 = arith.constant 0 : index
    %c0_173 = arith.constant 0 : index
    %200 = vector.load %arg6[%c0_171, %c7, %c0_172, %c0_173] : memref<1x8x8x8xf32, #tpu.memory_space<vmem>>, vector<1x1x8x8xf32>
    %201 = vector.shape_cast %200 : vector<1x1x8x8xf32> to vector<8x8xf32>
    %202 = arith.addf %199, %201 : vector<8x8xf32>
    %cst_174 = arith.constant dense<0xFF800000> : vector<8xf32>
    %203 = vector.multi_reduction <maximumf>, %202, %cst_174 [1] : vector<8x8xf32> to vector<8xf32>
    %204 = vector.shape_cast %203 : vector<8xf32> to vector<8x1xf32>
    %205 = vector.broadcast %204 : vector<8x1xf32> to vector<8x8xf32>
    %206 = arith.subf %202, %205 : vector<8x8xf32>
    %207 = math.exp %206 : vector<8x8xf32>
    %cst_175 = arith.constant dense<0.000000e+00> : vector<8xf32>
    %208 = vector.multi_reduction <add>, %207, %cst_175 [1] : vector<8x8xf32> to vector<8xf32>
    %209 = vector.shape_cast %208 : vector<8xf32> to vector<8x1xf32>
    %210 = tpu.reciprocal %209 {approx = true} : vector<8x1xf32> -> vector<8x1xf32>
    %211 = vector.broadcast %210 : vector<8x1xf32> to vector<8x8xf32>
    %212 = arith.mulf %207, %211 : vector<8x8xf32>
    %213 = arith.truncf %212 : vector<8x8xf32> to vector<8x8xbf16>
    %cst_176 = arith.constant dense<0.000000e+00> : vector<8x4xf32>
    %214 = tpu.matmul %213, %196, %cst_176 {dimension_numbers = #tpu.dot_dimension_numbers<[1], [0], [0], [1], [0, 0, 1, 1], [], []>} : vector<8x8xbf16>, vector<8x4xbf16>, vector<8x4xf32> -> vector<8x4xf32>
    %c0_177 = arith.constant 0 : index
    %c0_178 = arith.constant 0 : index
    %c0_179 = arith.constant 0 : index
    %c28_180 = arith.constant 28 : index
    %215 = vector.load %arg7[%c0_177, %c0_178, %c0_179, %c28_180] : memref<1x1x8x32xf32, #tpu.memory_space<vmem>>, vector<1x1x8x4xf32>
    %216 = vector.shape_cast %215 : vector<1x1x8x4xf32> to vector<8x4xf32>
    %217 = vector.shape_cast %214 : vector<8x4xf32> to vector<1x1x8x4xf32>
    tpu.vector_store %arg7[%c0_177, %c0_178, %c0_179, %c28_180], %217 {strides = array<i32>} : memref<1x1x8x32xf32, #tpu.memory_space<vmem>>, vector<1x1x8x4xf32>,
    return
  }
  func.func @transform_0(%arg0: i32, %arg1: i32) -> (i32, i32, i32, i32) {
    %c0_i32 = arith.constant 0 : i32
    %c0_i32_0 = arith.constant 0 : i32
    %c0_i32_1 = arith.constant 0 : i32
    return %arg0, %arg1, %c0_i32, %c0_i32_0 : i32, i32, i32, i32
  }
  func.func @transform_1(%arg0: i32, %arg1: i32) -> (i32, i32, i32, i32) {
    %c0_i32 = arith.constant 0 : i32
    %c0_i32_0 = arith.constant 0 : i32
    %c0_i32_1 = arith.constant 0 : i32
    return %arg0, %arg1, %c0_i32, %c0_i32_0 : i32, i32, i32, i32
  }
  func.func @transform_2(%arg0: i32, %arg1: i32) -> (i32, i32, i32, i32) {
    %c0_i32 = arith.constant 0 : i32
    %c0_i32_0 = arith.constant 0 : i32
    %c0_i32_1 = arith.constant 0 : i32
    return %arg0, %arg1, %c0_i32, %c0_i32_0 : i32, i32, i32, i32
  }
  func.func @transform_3(%arg0: i32, %arg1: i32) -> (i32, i32, i32, i32) {
    %c0_i32 = arith.constant 0 : i32
    %c0_i32_0 = arith.constant 0 : i32
    %c0_i32_1 = arith.constant 0 : i32
    return %arg0, %arg1, %c0_i32, %c0_i32_0 : i32, i32, i32, i32
  }
  func.func @transform_4(%arg0: i32, %arg1: i32) -> (i32, i32, i32, i32) {
    %c0_i32 = arith.constant 0 : i32
    %c0_i32_0 = arith.constant 0 : i32
    %c0_i32_1 = arith.constant 0 : i32
    %c0_i32_2 = arith.constant 0 : i32
    return %arg0, %c0_i32, %c0_i32_0, %c0_i32_1 : i32, i32, i32, i32
  }
  func.func @transform_5(%arg0: i32, %arg1: i32) -> (i32, i32, i32, i32) {
    %c0_i32 = arith.constant 0 : i32
    %c0_i32_0 = arith.constant 0 : i32
    %c0_i32_1 = arith.constant 0 : i32
    return %arg0, %arg1, %c0_i32, %c0_i32_0 : i32, i32, i32, i32
  }
}

</mosaic_0001>

<llo_original>
// kernel: tpu_custom_call.1
$region0: #{tpu_custom_call.1}
  #allocation0 [shape = 'u32[]', space=smem, size = 0x4, offset = 0x4, fixed_abs, tag = 'smem constant byte address 0x4 - core index']
  #allocation1 [shape = 'u32[144,128]{1,0:T(1,128)}', space=vmem, size = 0x12000, scoped, tag = 'internal scratch']
  %s0 = inlined_call_operand.hbm [shape: bf16[2,2,8,32], index: 0, kind: input, shape index: {}]
  %s1 = inlined_call_operand.hbm [shape: bf16[2,2,8,32], index: 1, kind: input, shape index: {}]
  %s2 = inlined_call_operand.hbm [shape: bf16[2,2,8,32], index: 2, kind: input, shape index: {}]
  %s3 = inlined_call_operand.vmem [shape: f32[2,2,1,8], index: 3, kind: input, shape index: {}]
  %s4 = inlined_call_operand.hbm [shape: f32[2,8,8,8], index: 4, kind: input, shape index: {}]
  %s5 = inlined_call_operand.hbm [shape: f32[2,2,8,32], index: 5, kind: output, shape index: {}]
  %s6 = sld [smem:[#allocation0]]
  $region69: #{tpu_custom_call.1} parent=0
    _
  %s8 = ssub.s32 1, %s6
  %s9 = scalar_select 0, %s8, %s6
  $region1: #{tpu_custom_call.1} parent=0
    #allocation2 [shape = 'u8[4096]{0}', space=vmem, size = 0x1000, scoped, tag = 'input window, operand 0']
    #allocation3 [shape = 's32[2]{0}', space=sflag, size = 0x8, scoped, tag = 'scoped memory for tpu_custom_call.1']
    #allocation4 [shape = 's32[2]{0}', space=sflag, size = 0x8, scoped, tag = 'scoped memory for tpu_custom_call.1']
    #allocation5 [shape = 'u8[4096]{0}', space=vmem, size = 0x1000, scoped, tag = 'input window, operand 1']
    #allocation6 [shape = 's32[2]{0}', space=sflag, size = 0x8, scoped, tag = 'scoped memory for tpu_custom_call.1']
    #allocation7 [shape = 'u8[4096]{0}', space=vmem, size = 0x1000, scoped, tag = 'input window, operand 2']
    #allocation8 [shape = 'u8[65536]{0}', space=vmem, size = 0x10000, scoped, tag = 'input window, operand 4']
    #allocation9 [shape = 's32[2]{0}', space=sflag, size = 0x8, scoped, tag = 'scoped memory for tpu_custom_call.1']
    #allocation10 [shape = 'u8[8192]{0}', space=vmem, size = 0x2000, scoped, tag = 'output window, operand 0']
    %10 = vsyncpa [#allocation3], 0
    %s11 = scalar_lea.sflag [#allocation3], 1
    %12 = vsyncpa %s11, 0
    %13 = vsyncpa [#allocation6], 0
    %s14 = scalar_lea.sflag [#allocation6], 1
    %15 = vsyncpa %s14, 0
    %16 = vsyncpa [#allocation9], 0
    %s17 = scalar_lea.sflag [#allocation9], 1
    %18 = vsyncpa %s17, 0
    %19 = vsyncpa [#allocation4], 0
    %s20 = scalar_lea.sflag [#allocation4], 1
    %21 = vsyncpa %s20, 0
    loop: start=0, step=1, limit=6
    $region2: #{tpu_custom_call.1} parent=1 // loop_pre_header
      _
    $region3: #{tpu_custom_call.1} parent=1 // loop_header
      %s23 = sphi 0, %s27
      %p24 = scmp.ge.s32.totalorder %s23, 6
      %s30 = sphi 0, %s42
      %s31 = sphi 0, %s38
      %s32 = sphi 0, %s30
      %s33 = sphi 0, %s31
      %s34 = sphi 0, %s32
      %s35 = sphi 0, %s33
      %s47 = sphi 0, %s49
      %s50 = sphi 0, %s47
      %s51 = sphi 0, %s50
      %s67 = sphi 0, %s51
      %s75 = sphi 0, %s77
      %s78 = sphi 0, %s75
      %s79 = sphi 0, %s78
      %s95 = sphi 0, %s79
      %s103 = sphi 0, %s105
      %s106 = sphi 0, %s103
      %s107 = sphi 0, %s106
      %s123 = sphi 0, %s107
      %s131 = sphi 0, %s133
      %s134 = sphi 0, %s131
      %s135 = sphi 0, %s134
      %s151 = sphi 0, %s135
      %s157 = sphi 0, %s159
      %s160 = sphi 0, %s157
      %s161 = sphi 0, %s160
      %s177 = sphi 0, %s161
      %s185 = sphi 0, %s187
      %s188 = sphi 0, %s185
      %s189 = sphi 0, %s188
      %s205 = sphi 0, %s189
    $region4: #{tpu_custom_call.1} parent=1 // loop_header_branch
      %26 = sbr.rel (%p24) target = $region8
    $region5: #{tpu_custom_call.1} parent=1 // loop_body
      %s28 = ssub.s32 %s23, 1
      %s29 = ssub.s32 %s23, 2
      %s36 = sadd.s32 1, %s31
      %p37 = scmp.ge.s32.totalorder %s36, 2
      %s38 = scalar_select %p37, 0, %s36
      %s39 = sadd.s32 1, %s30
      %s40 = scalar_select %p37, %s39, %s30
      %p41 = scmp.ge.s32.totalorder %s40, 2
      %s42 = scalar_select %p41, 0, %s40
      %s43 = ssub.s32 %s30, %s42
      %s44 = ssub.s32 %s31, %s38
      %s45 = sor.u32 %s43, %s44
      %p46 = scmp.eq.s32.totalorder %s45, 0
      %s48 = sadd.s32 %s47, 1
      %s49 = scalar_select %p46, %s47, %s48
      %p52 = pneg %p46
      %p53 = scmp.eq.s32.totalorder %s23, 3
      %p54 = por %p52, %p53
      %p55 = scmp.ne.s32.totalorder %s47, %s50
      %p56 = scmp.eq.s32.totalorder %s23, 0
      %p57 = por %p55, %p56
      %p58 = scmp.ne.s32.totalorder %s47, %s50
      %p59 = scmp.eq.s32.totalorder %s28, 3
      %p60 = por %p58, %p59
      %p61 = scmp.ne.s32.totalorder %s50, %s51
      %p62 = scmp.eq.s32.totalorder %s28, 0
      %p63 = por %p61, %p62
      %p64 = scmp.ne.s32.totalorder %s50, %s51
      %p65 = scmp.eq.s32.totalorder %s29, 3
      %p66 = por %p64, %p65
      %p68 = scmp.ne.s32.totalorder %s51, %s67
      %p69 = scmp.eq.s32.totalorder %s29, 0
      %p70 = por %p68, %p69
      %s71 = ssub.s32 %s30, %s42
      %s72 = ssub.s32 %s31, %s38
      %s73 = sor.u32 %s71, %s72
      %p74 = scmp.eq.s32.totalorder %s73, 0
      %s76 = sadd.s32 %s75, 1
      %s77 = scalar_select %p74, %s75, %s76
      %p80 = pneg %p74
      %p81 = scmp.eq.s32.totalorder %s23, 3
      %p82 = por %p80, %p81
      %p83 = scmp.ne.s32.totalorder %s75, %s78
      %p84 = scmp.eq.s32.totalorder %s23, 0
      %p85 = por %p83, %p84
      %p86 = scmp.ne.s32.totalorder %s75, %s78
      %p87 = scmp.eq.s32.totalorder %s28, 3
      %p88 = por %p86, %p87
      %p89 = scmp.ne.s32.totalorder %s78, %s79
      %p90 = scmp.eq.s32.totalorder %s28, 0
      %p91 = por %p89, %p90
      %p92 = scmp.ne.s32.totalorder %s78, %s79
      %p93 = scmp.eq.s32.totalorder %s29, 3
      %p94 = por %p92, %p93
      %p96 = scmp.ne.s32.totalorder %s79, %s95
      %p97 = scmp.eq.s32.totalorder %s29, 0
      %p98 = por %p96, %p97
      %s99 = ssub.s32 %s30, %s42
      %s100 = ssub.s32 %s31, %s38
      %s101 = sor.u32 %s99, %s100
      %p102 = scmp.eq.s32.totalorder %s101, 0
      %s104 = sadd.s32 %s103, 1
      %s105 = scalar_select %p102, %s103, %s104
      %p108 = pneg %p102
      %p109 = scmp.eq.s32.totalorder %s23, 3
      %p110 = por %p108, %p109
      %p111 = scmp.ne.s32.totalorder %s103, %s106
      %p112 = scmp.eq.s32.totalorder %s23, 0
      %p113 = por %p111, %p112
      %p114 = scmp.ne.s32.totalorder %s103, %s106
      %p115 = scmp.eq.s32.totalorder %s28, 3
      %p116 = por %p114, %p115
      %p117 = scmp.ne.s32.totalorder %s106, %s107
      %p118 = scmp.eq.s32.totalorder %s28, 0
      %p119 = por %p117, %p118
      %p120 = scmp.ne.s32.totalorder %s106, %s107
      %p121 = scmp.eq.s32.totalorder %s29, 3
      %p122 = por %p120, %p121
      %p124 = scmp.ne.s32.totalorder %s107, %s123
      %p125 = scmp.eq.s32.totalorder %s29, 0
      %p126 = por %p124, %p125
      %s127 = ssub.s32 %s30, %s42
      %s128 = ssub.s32 %s31, %s38
      %s129 = sor.u32 %s127, %s128
      %p130 = scmp.eq.s32.totalorder %s129, 0
      %s132 = sadd.s32 %s131, 1
      %s133 = scalar_select %p130, %s131, %s132
      %p136 = pneg %p130
      %p137 = scmp.eq.s32.totalorder %s23, 3
      %p138 = por %p136, %p137
      %p139 = scmp.ne.s32.totalorder %s131, %s134
      %p140 = scmp.eq.s32.totalorder %s23, 0
      %p141 = por %p139, %p140
      %p142 = scmp.ne.s32.totalorder %s131, %s134
      %p143 = scmp.eq.s32.totalorder %s28, 3
      %p144 = por %p142, %p143
      %p145 = scmp.ne.s32.totalorder %s134, %s135
      %p146 = scmp.eq.s32.totalorder %s28, 0
      %p147 = por %p145, %p146
      %p148 = scmp.ne.s32.totalorder %s134, %s135
      %p149 = scmp.eq.s32.totalorder %s29, 3
      %p150 = por %p148, %p149
      %p152 = scmp.ne.s32.totalorder %s135, %s151
      %p153 = scmp.eq.s32.totalorder %s29, 0
      %p154 = por %p152, %p153
      %s155 = ssub.s32 %s30, %s42
      %p156 = scmp.eq.s32.totalorder %s155, 0
      %s158 = sadd.s32 %s157, 1
      %s159 = scalar_select %p156, %s157, %s158
      %p162 = pneg %p156
      %p163 = scmp.eq.s32.totalorder %s23, 3
      %p164 = por %p162, %p163
      %p165 = scmp.ne.s32.totalorder %s157, %s160
      %p166 = scmp.eq.s32.totalorder %s23, 0
      %p167 = por %p165, %p166
      %p168 = scmp.ne.s32.totalorder %s157, %s160
      %p169 = scmp.eq.s32.totalorder %s28, 3
      %p170 = por %p168, %p169
      %p171 = scmp.ne.s32.totalorder %s160, %s161
      %p172 = scmp.eq.s32.totalorder %s28, 0
      %p173 = por %p171, %p172
      %p174 = scmp.ne.s32.totalorder %s160, %s161
      %p175 = scmp.eq.s32.totalorder %s29, 3
      %p176 = por %p174, %p175
      %p178 = scmp.ne.s32.totalorder %s161, %s177
      %p179 = scmp.eq.s32.totalorder %s29, 0
      %p180 = por %p178, %p179
      %s181 = ssub.s32 %s30, %s42
      %s182 = ssub.s32 %s31, %s38
      %s183 = sor.u32 %s181, %s182
      %p184 = scmp.eq.s32.totalorder %s183, 0
      %s186 = sadd.s32 %s185, 1
      %s187 = scalar_select %p184, %s185, %s186
      %p190 = pneg %p184
      %p191 = scmp.eq.s32.totalorder %s23, 3
      %p192 = por %p190, %p191
      %p193 = scmp.ne.s32.totalorder %s185, %s188
      %p194 = scmp.eq.s32.totalorder %s23, 0
      %p195 = por %p193, %p194
      %p196 = scmp.ne.s32.totalorder %s185, %s188
      %p197 = scmp.eq.s32.totalorder %s28, 3
      %p198 = por %p196, %p197
      %p199 = scmp.ne.s32.totalorder %s188, %s189
      %p200 = scmp.eq.s32.totalorder %s28, 0
      %p201 = por %p199, %p200
      %p202 = scmp.ne.s32.totalorder %s188, %s189
      %p203 = scmp.eq.s32.totalorder %s29, 3
      %p204 = por %p202, %p203
      %p206 = scmp.ne.s32.totalorder %s189, %s205
      %p207 = scmp.eq.s32.totalorder %s29, 0
      %p208 = por %p206, %p207
      %p209 = scmp.le.s32.totalorder 1, %s23
      %p210 = scmp.lt.s32.totalorder %s23, 5
      %p211 = pnand %p209, %p210
      %p212 = pneg %p211
      // Predicated region
      $region9: #{tpu_custom_call.1} parent=5 // pred_check
        _
      $region10: #{tpu_custom_call.1} parent=5 // pred_check_branch
        %214 = sbr.rel (%p211) target = $region12
      $region11: #{tpu_custom_call.1} parent=5 // pred_region
        %s215 = ssub.s32 %s23, 1
      $region12: #{tpu_custom_call.1} parent=5 // pred_fallthru
        _
      %p216 = scmp.lt.s32.totalorder %s23, 4
      // Predicated region
      $region13: #{tpu_custom_call.1} parent=5 // pred_check
        %p217 = pneg %p216
      $region14: #{tpu_custom_call.1} parent=5 // pred_check_branch
        %219 = sbr.rel (%p217) target = $region16
      $region15: #{tpu_custom_call.1} parent=5 // pred_region
        // Predicated region
        $region17: #{tpu_custom_call.1} parent=15 // pred_check
          %p220 = pneg %p57
        $region18: #{tpu_custom_call.1} parent=15 // pred_check_branch
          %222 = sbr.rel (%p220) target = $region20
        $region19: #{tpu_custom_call.1} parent=15 // pred_region
          %s223 = sand.u32 %s47, 1
          %s224 = scalar_lea.sflag [#allocation3], %s223
          %s225 = sand.u32 %s47, 1
          %s226 = smul.addr %s225, 4
          %s227 = scalar_lea.vmem [#allocation2], %s226
          %s229 = ssub.s32 64, 64
          %230 = vsyncadd %s224, %s229
          %s231 = smul.addr %s30, 2
          %s232 = sadd.s32 %s31, %s231
          %s233 = smul.addr %s232, 64
          %s234 = scalar_lea.hbm %s0, %s233
          %s236 = sshll.u32 %s227, 4
          %s237 = int_to_ptr.vmem [resolvable:$true] %s236
          %239 = dma.hbm_to_vmem [thread:$0]  %s234, 64, %s237, %s224
        $region20: #{tpu_custom_call.1} parent=15 // pred_fallthru
          _
        // Predicated region
        $region21: #{tpu_custom_call.1} parent=15 // pred_check
          %p240 = pneg %p85
        $region22: #{tpu_custom_call.1} parent=15 // pred_check_branch
          %242 = sbr.rel (%p240) target = $region24
        $region23: #{tpu_custom_call.1} parent=15 // pred_region
          %s243 = sand.u32 %s23, 1
          %s244 = scalar_lea.sflag [#allocation6], %s243
          %s245 = sand.u32 %s75, 1
          %s246 = smul.addr %s245, 4
          %s247 = scalar_lea.vmem [#allocation5], %s246
          %s249 = ssub.s32 64, 64
          %250 = vsyncadd %s244, %s249
          %s251 = smul.addr %s30, 2
          %s252 = sadd.s32 %s31, %s251
          %s253 = smul.addr %s252, 64
          %s254 = scalar_lea.hbm %s1, %s253
          %s256 = sshll.u32 %s247, 4
          %s257 = int_to_ptr.vmem [resolvable:$true] %s256
          %259 = dma.hbm_to_vmem [thread:$0]  %s254, 64, %s257, %s244
        $region24: #{tpu_custom_call.1} parent=15 // pred_fallthru
          _
        // Predicated region
        $region25: #{tpu_custom_call.1} parent=15 // pred_check
          %p260 = pneg %p113
        $region26: #{tpu_custom_call.1} parent=15 // pred_check_branch
          %262 = sbr.rel (%p260) target = $region28
        $region27: #{tpu_custom_call.1} parent=15 // pred_region
          %s263 = sand.u32 %s23, 1
          %s264 = scalar_lea.sflag [#allocation6], %s263
          %s265 = sand.u32 %s103, 1
          %s266 = smul.addr %s265, 4
          %s267 = scalar_lea.vmem [#allocation7], %s266
          %s269 = ssub.s32 64, 64
          %270 = vsyncadd %s264, %s269
          %s271 = smul.addr %s30, 2
          %s272 = sadd.s32 %s31, %s271
          %s273 = smul.addr %s272, 64
          %s274 = scalar_lea.hbm %s2, %s273
          %s276 = sshll.u32 %s267, 4
          %s277 = int_to_ptr.vmem [resolvable:$true] %s276
          %279 = dma.hbm_to_vmem [thread:$0]  %s274, 64, %s277, %s264
        $region28: #{tpu_custom_call.1} parent=15 // pred_fallthru
          _
        // Predicated region
        $region29: #{tpu_custom_call.1} parent=15 // pred_check
          %p280 = pneg %p141
        $region30: #{tpu_custom_call.1} parent=15 // pred_check_branch
          %282 = sbr.rel (%p280) target = $region32
        $region31: #{tpu_custom_call.1} parent=15 // pred_region
          %p283 = scmp.lt.s32.totalorder %s30, 1
          %s284 = scalar_select %p283, %s30, 1
          %p285 = scmp.lt.s32.totalorder %s31, 1
          %s286 = scalar_select %p285, %s31, 1
          %s287 = smul.addr %s284, 2
          %s288 = sadd.s32 %s286, %s287
          %s289 = scalar_lea.vmem %s3, %s288
        $region32: #{tpu_custom_call.1} parent=15 // pred_fallthru
          _
        // Predicated region
        $region33: #{tpu_custom_call.1} parent=15 // pred_check
          %p290 = pneg %p167
        $region34: #{tpu_custom_call.1} parent=15 // pred_check_branch
          %292 = sbr.rel (%p290) target = $region36
        $region35: #{tpu_custom_call.1} parent=15 // pred_region
          %s293 = sand.u32 %s157, 1
          %s294 = scalar_lea.sflag [#allocation9], %s293
          %s295 = sand.u32 %s157, 1
          %s296 = smul.addr %s295, 64
          %s297 = scalar_lea.vmem [#allocation8], %s296
          %s299 = ssub.s32 1024, 1024
          %300 = vsyncadd %s294, %s299
          %s301 = smul.addr %s30, 8
          %s302 = smul.addr %s301, 128
          %s303 = scalar_lea.hbm %s4, %s302
          %s304 = sshll.u32 %s297, 4
          %s305 = int_to_ptr.vmem [resolvable:$true] %s304
          %310 = dma.hbm_to_vmem [thread:$0]  %s303, 1024, %s305, %s294, 128, 128, 8
        $region36: #{tpu_custom_call.1} parent=15 // pred_fallthru
          _
      $region16: #{tpu_custom_call.1} parent=5 // pred_fallthru
        _
      %p311 = scmp.le.s32.totalorder 1, %s23
      %p312 = scmp.lt.s32.totalorder %s23, 5
      %p313 = pnand %p311, %p312
      %p314 = pneg %p313
      // Predicated region
      $region37: #{tpu_custom_call.1} parent=5 // pred_check
        _
      $region38: #{tpu_custom_call.1} parent=5 // pred_check_branch
        %316 = sbr.rel (%p313) target = $region40
      $region39: #{tpu_custom_call.1} parent=5 // pred_region
        %s317 = ssub.s32 %s23, 1
        %s318 = sand.u32 %s50, 1
        %s319 = scalar_lea.sflag [#allocation3], %s318
        %s320 = sand.u32 %s50, 1
        %s321 = smul.addr %s320, 4
        %s322 = scalar_lea.vmem [#allocation2], %s321
        // Predicated region
        $region41: #{tpu_custom_call.1} parent=39 // pred_check
          %p323 = pneg %p63
        $region42: #{tpu_custom_call.1} parent=39 // pred_check_branch
          %325 = sbr.rel (%p323) target = $region44
        $region43: #{tpu_custom_call.1} parent=39 // pred_region
          %326 = dma.done %s319, 64
        $region44: #{tpu_custom_call.1} parent=39 // pred_fallthru
          _
        %s327 = sand.u32 %s28, 1
        %s328 = scalar_lea.sflag [#allocation6], %s327
        %s329 = sand.u32 %s78, 1
        %s330 = smul.addr %s329, 4
        %s331 = scalar_lea.vmem [#allocation5], %s330
        // Predicated region
        $region45: #{tpu_custom_call.1} parent=39 // pred_check
          %p332 = pneg %p91
        $region46: #{tpu_custom_call.1} parent=39 // pred_check_branch
          %334 = sbr.rel (%p332) target = $region48
        $region47: #{tpu_custom_call.1} parent=39 // pred_region
          %335 = dma.done %s328, 64
        $region48: #{tpu_custom_call.1} parent=39 // pred_fallthru
          _
        %s336 = sand.u32 %s28, 1
        %s337 = scalar_lea.sflag [#allocation6], %s336
        %s338 = sand.u32 %s106, 1
        %s339 = smul.addr %s338, 4
        %s340 = scalar_lea.vmem [#allocation7], %s339
        // Predicated region
        $region49: #{tpu_custom_call.1} parent=39 // pred_check
          %p341 = pneg %p119
        $region50: #{tpu_custom_call.1} parent=39 // pred_check_branch
          %343 = sbr.rel (%p341) target = $region52
        $region51: #{tpu_custom_call.1} parent=39 // pred_region
          %344 = dma.done %s337, 64
        $region52: #{tpu_custom_call.1} parent=39 // pred_fallthru
          _
        %s345 = sand.u32 %s160, 1
        %s346 = scalar_lea.sflag [#allocation9], %s345
        %s347 = sand.u32 %s160, 1
        %s348 = smul.addr %s347, 64
        %s349 = scalar_lea.vmem [#allocation8], %s348
        // Predicated region
        $region53: #{tpu_custom_call.1} parent=39 // pred_check
          %p350 = pneg %p173
        $region54: #{tpu_custom_call.1} parent=39 // pred_check_branch
          %352 = sbr.rel (%p350) target = $region56
        $region55: #{tpu_custom_call.1} parent=39 // pred_region
          %353 = dma.done %s346, 1024
        $region56: #{tpu_custom_call.1} parent=39 // pred_fallthru
          _
        %s354 = sand.u32 %s50, 1
        %s355 = scalar_lea.sflag [#allocation3], %s354
        %s356 = sand.u32 %s50, 1
        %s357 = smul.addr %s356, 4
        %s358 = scalar_lea.vmem [#allocation2], %s357
        %p359 = pneg %p63
        %p360 = pneg %p60
        %s361 = sand.u32 %s28, 1
        %s362 = scalar_lea.sflag [#allocation6], %s361
        %s363 = sand.u32 %s78, 1
        %s364 = smul.addr %s363, 4
        %s365 = scalar_lea.vmem [#allocation5], %s364
        %p366 = pneg %p91
        %p367 = pneg %p88
        %s368 = sand.u32 %s28, 1
        %s369 = scalar_lea.sflag [#allocation6], %s368
        %s370 = sand.u32 %s106, 1
        %s371 = smul.addr %s370, 4
        %s372 = scalar_lea.vmem [#allocation7], %s371
        %p373 = pneg %p119
        %p374 = pneg %p116
        %p375 = scmp.lt.s32.totalorder %s32, 1
        %s376 = scalar_select %p375, %s32, 1
        %p377 = scmp.lt.s32.totalorder %s33, 1
        %s378 = scalar_select %p377, %s33, 1
        %s379 = smul.addr %s376, 2
        %s380 = sadd.s32 %s378, %s379
        %s381 = scalar_lea.vmem %s3, %s380
        %p382 = pneg %p147
        %p383 = pneg %p144
        %s384 = sand.u32 %s160, 1
        %s385 = scalar_lea.sflag [#allocation9], %s384
        %s386 = sand.u32 %s160, 1
        %s387 = smul.addr %s386, 64
        %s388 = scalar_lea.vmem [#allocation8], %s387
        %p389 = pneg %p173
        %p390 = pneg %p170
        %p391 = pneg %p201
        %p392 = pneg %p198
        %s393 = sand.u32 %s188, 1
        %s394 = scalar_lea.sflag [#allocation4], %s393
        %s395 = sand.u32 %s188, 1
        %s396 = smul.addr %s395, 8
        %s397 = scalar_lea.vmem [#allocation10], %s396
        %p398 = scmp.lt.s32.totalorder %s32, 1
        %s399 = scalar_select %p398, %s32, 1
        %p400 = scmp.lt.s32.totalorder %s33, 1
        %s401 = scalar_select %p400, %s33, 1
        %s402 = smul.addr %s399, 2
        %s403 = sadd.s32 %s401, %s402
        %s404 = scalar_lea.vmem %s3, %s403
        %v406 = vld [vmem:[%s404] sm:$0x1]
        %v407 = vld [vmem:[%s322] sm:$0xf]
        %v408 = vld [vmem:[%s331] sm:$0xf]
        %v409 = vld [vmem:[%s340] sm:$0xf]
        %v411 = vlaneseq
        %v412 = vshrl.u32 %v411, 7
        %v413 = vsub.s32 0, %v412
        %v414 = vrot.slane %v406, %v413
        %vm416 = vcmask 31744
        %v418 = vsel %vm416, %v407, 0
        %v421 = vsel %vm416, %v408, 0
        %423 = vmatprep.subr.bf16.mxu0 0
        %424 = vmatpush1.bf16.xpose.msra.mxu0 %v421
        %425 = vmatprep.subr.bf16.mxu0 0
        %426 = vmatpush1.bf16.xpose.msra.mxu0 0
        %427 = vmatprep.subr.bf16.mxu0 0
        %428 = vmatpush1.bf16.xpose.msra.mxu0 0
        %429 = vmatprep.subr.bf16.mxu0 0
        %430 = vmatpush1.bf16.xpose.msra.mxu0 0
        %431 = vmatprep.subr.bf16.mxu0 0
        %432 = vmatpush1.bf16.xpose.msra.mxu0 0
        %433 = vmatprep.subr.bf16.mxu0 0
        %434 = vmatpush1.bf16.xpose.msra.mxu0 0
        %435 = vmatprep.subr.bf16.mxu0 0
        %436 = vmatpush1.bf16.xpose.msra.mxu0 0
        %437 = vmatprep.subr.bf16.mxu0 0
        %438 = vmatpush1.bf16.xpose.msra.mxu0 0
        %439 = vmatprep.subr.bf16.mxu0 0
        %440 = vmatpush1.bf16.xpose.msra.mxu0 0
        %441 = vmatprep.subr.bf16.mxu0 0
        %442 = vmatpush1.bf16.xpose.msra.mxu0 0
        %443 = vmatprep.subr.bf16.mxu0 0
        %444 = vmatpush1.bf16.xpose.msra.mxu0 0
        %445 = vmatprep.subr.bf16.mxu0 0
        %446 = vmatpush1.bf16.xpose.msra.mxu0 0
        %447 = vmatprep.subr.bf16.mxu0 0
        %448 = vmatpush1.bf16.xpose.msra.mxu0 0
        %449 = vmatprep.subr.bf16.mxu0 0
        %450 = vmatpush1.bf16.xpose.msra.mxu0 0
        %451 = vmatprep.subr.bf16.mxu0 0
        %452 = vmatpush1.bf16.xpose.msra.mxu0 0
        %453 = vmatprep.subr.bf16.mxu0 0
        %454 = vmatpush1.bf16.xpose.msra.mxu0 0
        %455 = vmatprep.mubr.bf16.mxu0 0
        %456 = vmatmul.mubr.bf16.gmra.mrb[0].mxu0 %v418
        %v457 = vpop.f32.mrb[0].mxu0
        %v458 = vadd.f32 %v414, %v457
        %v459 = vpop.f32.mrb[0].mxu0
        %v460 = vpop.f32.mrb[0].mxu0
        %v461 = vpop.f32.mrb[0].mxu0
        %462 = vdwg.mxu0
        %v463 = vld [vmem:[%s349] sm:$0xff]
        %v464 = vadd.f32 %v458, %v463
        %vm465 = vcmask 64512
        %v466 = vsel %vm465, %v464, -inf
        %467 = vmax.xlane.f32.xlu0 %v466
        %v468 = vpop.xlane.xlu0 %467
        %v469 = vsub.f32 %v464, %v468
        %v470 = vmul.f32 %v469, 1.442695
        %v471 = vpow.pop %v470
        %v472 = vsel %vm465, %v471, 0.0
        %473 = vadd.xlane.f32.xlu0 %v472
        %v474 = vpop.xlane.xlu0 %473
        %v475 = vrcp.pop %v474
        %v476 = vmul.f32 %v471, %v475
        %v477 = vpack.c.bf16 %v476, %v476
        %v479 = vsel %vm465, %v477, 0
        %vm481 = vcmask 1043456
        %v483 = vsel %vm481, %v409, 0
        %485 = vmatprep.subr.bf16.mxu0 0
        %486 = vmatpush1.bf16.msra.mxu0 %v483
        %487 = vmatprep.subr.bf16.mxu0 0
        %488 = vmatpush1.bf16.msra.mxu0 0
        %489 = vmatprep.subr.bf16.mxu0 0
        %490 = vmatpush1.bf16.msra.mxu0 0
        %491 = vmatprep.subr.bf16.mxu0 0
        %492 = vmatpush1.bf16.msra.mxu0 0
        %493 = vmatprep.subr.bf16.mxu0 0
        %494 = vmatpush1.bf16.msra.mxu0 0
        %495 = vmatprep.subr.bf16.mxu0 0
        %496 = vmatpush1.bf16.msra.mxu0 0
        %497 = vmatprep.subr.bf16.mxu0 0
        %498 = vmatpush1.bf16.msra.mxu0 0
        %499 = vmatprep.subr.bf16.mxu0 0
        %500 = vmatpush1.bf16.msra.mxu0 0
        %501 = vmatprep.subr.bf16.mxu0 0
        %502 = vmatpush1.bf16.msra.mxu0 0
        %503 = vmatprep.subr.bf16.mxu0 0
        %504 = vmatpush1.bf16.msra.mxu0 0
        %505 = vmatprep.subr.bf16.mxu0 0
        %506 = vmatpush1.bf16.msra.mxu0 0
        %507 = vmatprep.subr.bf16.mxu0 0
        %508 = vmatpush1.bf16.msra.mxu0 0
        %509 = vmatprep.subr.bf16.mxu0 0
        %510 = vmatpush1.bf16.msra.mxu0 0
        %511 = vmatprep.subr.bf16.mxu0 0
        %512 = vmatpush1.bf16.msra.mxu0 0
        %513 = vmatprep.subr.bf16.mxu0 0
        %514 = vmatpush1.bf16.msra.mxu0 0
        %515 = vmatprep.subr.bf16.mxu0 0
        %516 = vmatpush1.bf16.msra.mxu0 0
        %517 = vmatprep.mubr.bf16.mxu0 0
        %518 = vmatmul.mubr.bf16.gmra.mrb[0].mxu0 %v479
        %v519 = vpop.f32.mrb[0].mxu0
        %v520 = vadd.f32 0.0, %v519
        %v521 = vpop.f32.mrb[0].mxu0
        %v522 = vpop.f32.mrb[0].mxu0
        %v523 = vpop.f32.mrb[0].mxu0
        %524 = vdwg.mxu0
        %525 = vst.msk [vmem:[%s397] sm:$0xff] %vm416, %v520
        %v526 = vld [vmem:[%s322] sm:$0xf]
        %v527 = vld [vmem:[%s331] sm:$0xf]
        %v528 = vld [vmem:[%s340] sm:$0xf]
        %v530 = vunpack.c.l.b16 %v526
        %v531 = vpack.c.b16 %v530, %v530
        %532 = vrot.lane.b32.xlu0 %v531, 124
        %v533 = vpop.permute.xlu0 %532
        %v535 = vunpack.c.l.b16 %v527
        %v536 = vpack.c.b16 %v535, %v535
        %537 = vrot.lane.b32.xlu0 %v536, 124
        %v538 = vpop.permute.xlu0 %537
        %v540 = vsel %vm416, %v533, 0
        %v543 = vsel %vm416, %v538, 0
        %545 = vmatprep.subr.bf16.mxu0 0
        %546 = vmatpush1.bf16.xpose.msra.mxu0 %v543
        %547 = vmatprep.subr.bf16.mxu0 0
        %548 = vmatpush1.bf16.xpose.msra.mxu0 0
        %549 = vmatprep.subr.bf16.mxu0 0
        %550 = vmatpush1.bf16.xpose.msra.mxu0 0
        %551 = vmatprep.subr.bf16.mxu0 0
        %552 = vmatpush1.bf16.xpose.msra.mxu0 0
        %553 = vmatprep.subr.bf16.mxu0 0
        %554 = vmatpush1.bf16.xpose.msra.mxu0 0
        %555 = vmatprep.subr.bf16.mxu0 0
        %556 = vmatpush1.bf16.xpose.msra.mxu0 0
        %557 = vmatprep.subr.bf16.mxu0 0
        %558 = vmatpush1.bf16.xpose.msra.mxu0 0
        %559 = vmatprep.subr.bf16.mxu0 0
        %560 = vmatpush1.bf16.xpose.msra.mxu0 0
        %561 = vmatprep.subr.bf16.mxu0 0
        %562 = vmatpush1.bf16.xpose.msra.mxu0 0
        %563 = vmatprep.subr.bf16.mxu0 0
        %564 = vmatpush1.bf16.xpose.msra.mxu0 0
        %565 = vmatprep.subr.bf16.mxu0 0
        %566 = vmatpush1.bf16.xpose.msra.mxu0 0
        %567 = vmatprep.subr.bf16.mxu0 0
        %568 = vmatpush1.bf16.xpose.msra.mxu0 0
        %569 = vmatprep.subr.bf16.mxu0 0
        %570 = vmatpush1.bf16.xpose.msra.mxu0 0
        %571 = vmatprep.subr.bf16.mxu0 0
        %572 = vmatpush1.bf16.xpose.msra.mxu0 0
        %573 = vmatprep.subr.bf16.mxu0 0
        %574 = vmatpush1.bf16.xpose.msra.mxu0 0
        %575 = vmatprep.subr.bf16.mxu0 0
        %576 = vmatpush1.bf16.xpose.msra.mxu0 0
        %577 = vmatprep.mubr.bf16.mxu0 0
        %578 = vmatmul.mubr.bf16.gmra.mrb[0].mxu0 %v540
        %v579 = vpop.f32.mrb[0].mxu0
        %v580 = vadd.f32 %v414, %v579
        %v581 = vpop.f32.mrb[0].mxu0
        %v582 = vpop.f32.mrb[0].mxu0
        %v583 = vpop.f32.mrb[0].mxu0
        %584 = vdwg.mxu0
        %s585 = scalar_lea.vmem %s349, 8 [#allocation8]
        %v586 = vld [vmem:[%s585] sm:$0xff]
        %v587 = vadd.f32 %v580, %v586
        %v588 = vsel %vm465, %v587, -inf
        %589 = vmax.xlane.f32.xlu0 %v588
        %v590 = vpop.xlane.xlu0 %589
        %v591 = vsub.f32 %v587, %v590
        %v592 = vmul.f32 %v591, 1.442695
        %v593 = vpow.pop %v592
        %v594 = vsel %vm465, %v593, 0.0
        %595 = vadd.xlane.f32.xlu0 %v594
        %v596 = vpop.xlane.xlu0 %595
        %v597 = vrcp.pop %v596
        %v598 = vmul.f32 %v593, %v597
        %v599 = vpack.c.bf16 %v598, %v598
        %v601 = vunpack.c.l.b16 %v528
        %v602 = vpack.c.b16 %v601, %v601
        %603 = vrot.lane.b32.xlu0 %v602, 124
        %v604 = vpop.permute.xlu0 %603
        %v606 = vsel %vm465, %v599, 0
        %v609 = vsel %vm481, %v604, 0
        %611 = vmatprep.subr.bf16.mxu0 0
        %612 = vmatpush1.bf16.msra.mxu0 %v609
        %613 = vmatprep.subr.bf16.mxu0 0
        %614 = vmatpush1.bf16.msra.mxu0 0
        %615 = vmatprep.subr.bf16.mxu0 0
        %616 = vmatpush1.bf16.msra.mxu0 0
        %617 = vmatprep.subr.bf16.mxu0 0
        %618 = vmatpush1.bf16.msra.mxu0 0
        %619 = vmatprep.subr.bf16.mxu0 0
        %620 = vmatpush1.bf16.msra.mxu0 0
        %621 = vmatprep.subr.bf16.mxu0 0
        %622 = vmatpush1.bf16.msra.mxu0 0
        %623 = vmatprep.subr.bf16.mxu0 0
        %624 = vmatpush1.bf16.msra.mxu0 0
        %625 = vmatprep.subr.bf16.mxu0 0
        %626 = vmatpush1.bf16.msra.mxu0 0
        %627 = vmatprep.subr.bf16.mxu0 0
        %628 = vmatpush1.bf16.msra.mxu0 0
        %629 = vmatprep.subr.bf16.mxu0 0
        %630 = vmatpush1.bf16.msra.mxu0 0
        %631 = vmatprep.subr.bf16.mxu0 0
        %632 = vmatpush1.bf16.msra.mxu0 0
        %633 = vmatprep.subr.bf16.mxu0 0
        %634 = vmatpush1.bf16.msra.mxu0 0
        %635 = vmatprep.subr.bf16.mxu0 0
        %636 = vmatpush1.bf16.msra.mxu0 0
        %637 = vmatprep.subr.bf16.mxu0 0
        %638 = vmatpush1.bf16.msra.mxu0 0
        %639 = vmatprep.subr.bf16.mxu0 0
        %640 = vmatpush1.bf16.msra.mxu0 0
        %641 = vmatprep.subr.bf16.mxu0 0
        %642 = vmatpush1.bf16.msra.mxu0 0
        %643 = vmatprep.mubr.bf16.mxu0 0
        %644 = vmatmul.mubr.bf16.gmra.mrb[0].mxu0 %v606
        %v645 = vpop.f32.mrb[0].mxu0
        %v646 = vadd.f32 0.0, %v645
        %v647 = vpop.f32.mrb[0].mxu0
        %v648 = vpop.f32.mrb[0].mxu0
        %v649 = vpop.f32.mrb[0].mxu0
        %650 = vdwg.mxu0
        %652 = vrot.lane.b32.xlu0 %v646, 4
        %v653 = vpop.permute.xlu0 %652
        %vm655 = vcmask 64544
        %656 = vst.msk [vmem:[%s397] sm:$0xff] %vm655, %v653
        %v657 = vld [vmem:[%s322] sm:$0xf]
        %v658 = vld [vmem:[%s331] sm:$0xf]
        %v659 = vld [vmem:[%s340] sm:$0xf]
        %v661 = vunpack.c.l.b16 %v657
        %v662 = vpack.c.b16 %v661, %v661
        %663 = vrot.lane.b32.xlu0 %v662, 120
        %v664 = vpop.permute.xlu0 %663
        %v666 = vunpack.c.l.b16 %v658
        %v667 = vpack.c.b16 %v666, %v666
        %668 = vrot.lane.b32.xlu0 %v667, 120
        %v669 = vpop.permute.xlu0 %668
        %v671 = vsel %vm416, %v664, 0
        %v674 = vsel %vm416, %v669, 0
        %676 = vmatprep.subr.bf16.mxu0 0
        %677 = vmatpush1.bf16.xpose.msra.mxu0 %v674
        %678 = vmatprep.subr.bf16.mxu0 0
        %679 = vmatpush1.bf16.xpose.msra.mxu0 0
        %680 = vmatprep.subr.bf16.mxu0 0
        %681 = vmatpush1.bf16.xpose.msra.mxu0 0
        %682 = vmatprep.subr.bf16.mxu0 0
        %683 = vmatpush1.bf16.xpose.msra.mxu0 0
        %684 = vmatprep.subr.bf16.mxu0 0
        %685 = vmatpush1.bf16.xpose.msra.mxu0 0
        %686 = vmatprep.subr.bf16.mxu0 0
        %687 = vmatpush1.bf16.xpose.msra.mxu0 0
        %688 = vmatprep.subr.bf16.mxu0 0
        %689 = vmatpush1.bf16.xpose.msra.mxu0 0
        %690 = vmatprep.subr.bf16.mxu0 0
        %691 = vmatpush1.bf16.xpose.msra.mxu0 0
        %692 = vmatprep.subr.bf16.mxu0 0
        %693 = vmatpush1.bf16.xpose.msra.mxu0 0
        %694 = vmatprep.subr.bf16.mxu0 0
        %695 = vmatpush1.bf16.xpose.msra.mxu0 0
        %696 = vmatprep.subr.bf16.mxu0 0
        %697 = vmatpush1.bf16.xpose.msra.mxu0 0
        %698 = vmatprep.subr.bf16.mxu0 0
        %699 = vmatpush1.bf16.xpose.msra.mxu0 0
        %700 = vmatprep.subr.bf16.mxu0 0
        %701 = vmatpush1.bf16.xpose.msra.mxu0 0
        %702 = vmatprep.subr.bf16.mxu0 0
        %703 = vmatpush1.bf16.xpose.msra.mxu0 0
        %704 = vmatprep.subr.bf16.mxu0 0
        %705 = vmatpush1.bf16.xpose.msra.mxu0 0
        %706 = vmatprep.subr.bf16.mxu0 0
        %707 = vmatpush1.bf16.xpose.msra.mxu0 0
        %708 = vmatprep.mubr.bf16.mxu0 0
        %709 = vmatmul.mubr.bf16.gmra.mrb[0].mxu0 %v671
        %v710 = vpop.f32.mrb[0].mxu0
        %v711 = vadd.f32 %v414, %v710
        %v712 = vpop.f32.mrb[0].mxu0
        %v713 = vpop.f32.mrb[0].mxu0
        %v714 = vpop.f32.mrb[0].mxu0
        %715 = vdwg.mxu0
        %s716 = scalar_lea.vmem %s349, 16 [#allocation8]
        %v717 = vld [vmem:[%s716] sm:$0xff]
        %v718 = vadd.f32 %v711, %v717
        %v719 = vsel %vm465, %v718, -inf
        %720 = vmax.xlane.f32.xlu0 %v719
        %v721 = vpop.xlane.xlu0 %720
        %v722 = vsub.f32 %v718, %v721
        %v723 = vmul.f32 %v722, 1.442695
        %v724 = vpow.pop %v723
        %v725 = vsel %vm465, %v724, 0.0
        %726 = vadd.xlane.f32.xlu0 %v725
        %v727 = vpop.xlane.xlu0 %726
        %v728 = vrcp.pop %v727
        %v729 = vmul.f32 %v724, %v728
        %v730 = vpack.c.bf16 %v729, %v729
        %v732 = vunpack.c.l.b16 %v659
        %v733 = vpack.c.b16 %v732, %v732
        %734 = vrot.lane.b32.xlu0 %v733, 120
        %v735 = vpop.permute.xlu0 %734
        %v737 = vsel %vm465, %v730, 0
        %v740 = vsel %vm481, %v735, 0
        %742 = vmatprep.subr.bf16.mxu0 0
        %743 = vmatpush1.bf16.msra.mxu0 %v740
        %744 = vmatprep.subr.bf16.mxu0 0
        %745 = vmatpush1.bf16.msra.mxu0 0
        %746 = vmatprep.subr.bf16.mxu0 0
        %747 = vmatpush1.bf16.msra.mxu0 0
        %748 = vmatprep.subr.bf16.mxu0 0
        %749 = vmatpush1.bf16.msra.mxu0 0
        %750 = vmatprep.subr.bf16.mxu0 0
        %751 = vmatpush1.bf16.msra.mxu0 0
        %752 = vmatprep.subr.bf16.mxu0 0
        %753 = vmatpush1.bf16.msra.mxu0 0
        %754 = vmatprep.subr.bf16.mxu0 0
        %755 = vmatpush1.bf16.msra.mxu0 0
        %756 = vmatprep.subr.bf16.mxu0 0
        %757 = vmatpush1.bf16.msra.mxu0 0
        %758 = vmatprep.subr.bf16.mxu0 0
        %759 = vmatpush1.bf16.msra.mxu0 0
        %760 = vmatprep.subr.bf16.mxu0 0
        %761 = vmatpush1.bf16.msra.mxu0 0
        %762 = vmatprep.subr.bf16.mxu0 0
        %763 = vmatpush1.bf16.msra.mxu0 0
        %764 = vmatprep.subr.bf16.mxu0 0
        %765 = vmatpush1.bf16.msra.mxu0 0
        %766 = vmatprep.subr.bf16.mxu0 0
        %767 = vmatpush1.bf16.msra.mxu0 0
        %768 = vmatprep.subr.bf16.mxu0 0
        %769 = vmatpush1.bf16.msra.mxu0 0
        %770 = vmatprep.subr.bf16.mxu0 0
        %771 = vmatpush1.bf16.msra.mxu0 0
        %772 = vmatprep.subr.bf16.mxu0 0
        %773 = vmatpush1.bf16.msra.mxu0 0
        %774 = vmatprep.mubr.bf16.mxu0 0
        %775 = vmatmul.mubr.bf16.gmra.mrb[0].mxu0 %v737
        %v776 = vpop.f32.mrb[0].mxu0
        %v777 = vadd.f32 0.0, %v776
        %v778 = vpop.f32.mrb[0].mxu0
        %v779 = vpop.f32.mrb[0].mxu0
        %v780 = vpop.f32.mrb[0].mxu0
        %781 = vdwg.mxu0
        %783 = vrot.lane.b32.xlu0 %v777, 8
        %v784 = vpop.permute.xlu0 %783
        %vm786 = vcmask 97344
        %787 = vst.msk [vmem:[%s397] sm:$0xff] %vm786, %v784
        %v788 = vld [vmem:[%s322] sm:$0xf]
        %v789 = vld [vmem:[%s331] sm:$0xf]
        %v790 = vld [vmem:[%s340] sm:$0xf]
        %v792 = vunpack.c.l.b16 %v788
        %v793 = vpack.c.b16 %v792, %v792
        %794 = vrot.lane.b32.xlu0 %v793, 116
        %v795 = vpop.permute.xlu0 %794
        %v797 = vunpack.c.l.b16 %v789
        %v798 = vpack.c.b16 %v797, %v797
        %799 = vrot.lane.b32.xlu0 %v798, 116
        %v800 = vpop.permute.xlu0 %799
        %v802 = vsel %vm416, %v795, 0
        %v805 = vsel %vm416, %v800, 0
        %807 = vmatprep.subr.bf16.mxu0 0
        %808 = vmatpush1.bf16.xpose.msra.mxu0 %v805
        %809 = vmatprep.subr.bf16.mxu0 0
        %810 = vmatpush1.bf16.xpose.msra.mxu0 0
        %811 = vmatprep.subr.bf16.mxu0 0
        %812 = vmatpush1.bf16.xpose.msra.mxu0 0
        %813 = vmatprep.subr.bf16.mxu0 0
        %814 = vmatpush1.bf16.xpose.msra.mxu0 0
        %815 = vmatprep.subr.bf16.mxu0 0
        %816 = vmatpush1.bf16.xpose.msra.mxu0 0
        %817 = vmatprep.subr.bf16.mxu0 0
        %818 = vmatpush1.bf16.xpose.msra.mxu0 0
        %819 = vmatprep.subr.bf16.mxu0 0
        %820 = vmatpush1.bf16.xpose.msra.mxu0 0
        %821 = vmatprep.subr.bf16.mxu0 0
        %822 = vmatpush1.bf16.xpose.msra.mxu0 0
        %823 = vmatprep.subr.bf16.mxu0 0
        %824 = vmatpush1.bf16.xpose.msra.mxu0 0
        %825 = vmatprep.subr.bf16.mxu0 0
        %826 = vmatpush1.bf16.xpose.msra.mxu0 0
        %827 = vmatprep.subr.bf16.mxu0 0
        %828 = vmatpush1.bf16.xpose.msra.mxu0 0
        %829 = vmatprep.subr.bf16.mxu0 0
        %830 = vmatpush1.bf16.xpose.msra.mxu0 0
        %831 = vmatprep.subr.bf16.mxu0 0
        %832 = vmatpush1.bf16.xpose.msra.mxu0 0
        %833 = vmatprep.subr.bf16.mxu0 0
        %834 = vmatpush1.bf16.xpose.msra.mxu0 0
        %835 = vmatprep.subr.bf16.mxu0 0
        %836 = vmatpush1.bf16.xpose.msra.mxu0 0
        %837 = vmatprep.subr.bf16.mxu0 0
        %838 = vmatpush1.bf16.xpose.msra.mxu0 0
        %839 = vmatprep.mubr.bf16.mxu0 0
        %840 = vmatmul.mubr.bf16.gmra.mrb[0].mxu0 %v802
        %v841 = vpop.f32.mrb[0].mxu0
        %v842 = vadd.f32 %v414, %v841
        %v843 = vpop.f32.mrb[0].mxu0
        %v844 = vpop.f32.mrb[0].mxu0
        %v845 = vpop.f32.mrb[0].mxu0
        %846 = vdwg.mxu0
        %s847 = scalar_lea.vmem %s349, 24 [#allocation8]
        %v848 = vld [vmem:[%s847] sm:$0xff]
        %v849 = vadd.f32 %v842, %v848
        %v850 = vsel %vm465, %v849, -inf
        %851 = vmax.xlane.f32.xlu0 %v850
        %v852 = vpop.xlane.xlu0 %851
        %v853 = vsub.f32 %v849, %v852
        %v854 = vmul.f32 %v853, 1.442695
        %v855 = vpow.pop %v854
        %v856 = vsel %vm465, %v855, 0.0
        %857 = vadd.xlane.f32.xlu0 %v856
        %v858 = vpop.xlane.xlu0 %857
        %v859 = vrcp.pop %v858
        %v860 = vmul.f32 %v855, %v859
        %v861 = vpack.c.bf16 %v860, %v860
        %v863 = vunpack.c.l.b16 %v790
        %v864 = vpack.c.b16 %v863, %v863
        %865 = vrot.lane.b32.xlu0 %v864, 116
        %v866 = vpop.permute.xlu0 %865
        %v868 = vsel %vm465, %v861, 0
        %v871 = vsel %vm481, %v866, 0
        %873 = vmatprep.subr.bf16.mxu0 0
        %874 = vmatpush1.bf16.msra.mxu0 %v871
        %875 = vmatprep.subr.bf16.mxu0 0
        %876 = vmatpush1.bf16.msra.mxu0 0
        %877 = vmatprep.subr.bf16.mxu0 0
        %878 = vmatpush1.bf16.msra.mxu0 0
        %879 = vmatprep.subr.bf16.mxu0 0
        %880 = vmatpush1.bf16.msra.mxu0 0
        %881 = vmatprep.subr.bf16.mxu0 0
        %882 = vmatpush1.bf16.msra.mxu0 0
        %883 = vmatprep.subr.bf16.mxu0 0
        %884 = vmatpush1.bf16.msra.mxu0 0
        %885 = vmatprep.subr.bf16.mxu0 0
        %886 = vmatpush1.bf16.msra.mxu0 0
        %887 = vmatprep.subr.bf16.mxu0 0
        %888 = vmatpush1.bf16.msra.mxu0 0
        %889 = vmatprep.subr.bf16.mxu0 0
        %890 = vmatpush1.bf16.msra.mxu0 0
        %891 = vmatprep.subr.bf16.mxu0 0
        %892 = vmatpush1.bf16.msra.mxu0 0
        %893 = vmatprep.subr.bf16.mxu0 0
        %894 = vmatpush1.bf16.msra.mxu0 0
        %895 = vmatprep.subr.bf16.mxu0 0
        %896 = vmatpush1.bf16.msra.mxu0 0
        %897 = vmatprep.subr.bf16.mxu0 0
        %898 = vmatpush1.bf16.msra.mxu0 0
        %899 = vmatprep.subr.bf16.mxu0 0
        %900 = vmatpush1.bf16.msra.mxu0 0
        %901 = vmatprep.subr.bf16.mxu0 0
        %902 = vmatpush1.bf16.msra.mxu0 0
        %903 = vmatprep.subr.bf16.mxu0 0
        %904 = vmatpush1.bf16.msra.mxu0 0
        %905 = vmatprep.mubr.bf16.mxu0 0
        %906 = vmatmul.mubr.bf16.gmra.mrb[0].mxu0 %v868
        %v907 = vpop.f32.mrb[0].mxu0
        %v908 = vadd.f32 0.0, %v907
        %v909 = vpop.f32.mrb[0].mxu0
        %v910 = vpop.f32.mrb[0].mxu0
        %v911 = vpop.f32.mrb[0].mxu0
        %912 = vdwg.mxu0
        %914 = vrot.lane.b32.xlu0 %v908, 12
        %v915 = vpop.permute.xlu0 %914
        %vm917 = vcmask 130144
        %918 = vst.msk [vmem:[%s397] sm:$0xff] %vm917, %v915
        %v919 = vld [vmem:[%s322] sm:$0xf]
        %v920 = vld [vmem:[%s331] sm:$0xf]
        %v921 = vld [vmem:[%s340] sm:$0xf]
        %v923 = vunpack.c.l.b16 %v919
        %v924 = vpack.c.b16 %v923, %v923
        %925 = vrot.lane.b32.xlu0 %v924, 112
        %v926 = vpop.permute.xlu0 %925
        %v928 = vunpack.c.l.b16 %v920
        %v929 = vpack.c.b16 %v928, %v928
        %930 = vrot.lane.b32.xlu0 %v929, 112
        %v931 = vpop.permute.xlu0 %930
        %v933 = vsel %vm416, %v926, 0
        %v936 = vsel %vm416, %v931, 0
        %938 = vmatprep.subr.bf16.mxu0 0
        %939 = vmatpush1.bf16.xpose.msra.mxu0 %v936
        %940 = vmatprep.subr.bf16.mxu0 0
        %941 = vmatpush1.bf16.xpose.msra.mxu0 0
        %942 = vmatprep.subr.bf16.mxu0 0
        %943 = vmatpush1.bf16.xpose.msra.mxu0 0
        %944 = vmatprep.subr.bf16.mxu0 0
        %945 = vmatpush1.bf16.xpose.msra.mxu0 0
        %946 = vmatprep.subr.bf16.mxu0 0
        %947 = vmatpush1.bf16.xpose.msra.mxu0 0
        %948 = vmatprep.subr.bf16.mxu0 0
        %949 = vmatpush1.bf16.xpose.msra.mxu0 0
        %950 = vmatprep.subr.bf16.mxu0 0
        %951 = vmatpush1.bf16.xpose.msra.mxu0 0
        %952 = vmatprep.subr.bf16.mxu0 0
        %953 = vmatpush1.bf16.xpose.msra.mxu0 0
        %954 = vmatprep.subr.bf16.mxu0 0
        %955 = vmatpush1.bf16.xpose.msra.mxu0 0
        %956 = vmatprep.subr.bf16.mxu0 0
        %957 = vmatpush1.bf16.xpose.msra.mxu0 0
        %958 = vmatprep.subr.bf16.mxu0 0
        %959 = vmatpush1.bf16.xpose.msra.mxu0 0
        %960 = vmatprep.subr.bf16.mxu0 0
        %961 = vmatpush1.bf16.xpose.msra.mxu0 0
        %962 = vmatprep.subr.bf16.mxu0 0
        %963 = vmatpush1.bf16.xpose.msra.mxu0 0
        %964 = vmatprep.subr.bf16.mxu0 0
        %965 = vmatpush1.bf16.xpose.msra.mxu0 0
        %966 = vmatprep.subr.bf16.mxu0 0
        %967 = vmatpush1.bf16.xpose.msra.mxu0 0
        %968 = vmatprep.subr.bf16.mxu0 0
        %969 = vmatpush1.bf16.xpose.msra.mxu0 0
        %970 = vmatprep.mubr.bf16.mxu0 0
        %971 = vmatmul.mubr.bf16.gmra.mrb[0].mxu0 %v933
        %v972 = vpop.f32.mrb[0].mxu0
        %v973 = vadd.f32 %v414, %v972
        %v974 = vpop.f32.mrb[0].mxu0
        %v975 = vpop.f32.mrb[0].mxu0
        %v976 = vpop.f32.mrb[0].mxu0
        %977 = vdwg.mxu0
        %s978 = scalar_lea.vmem %s349, 32 [#allocation8]
        %v979 = vld [vmem:[%s978] sm:$0xff]
        %v980 = vadd.f32 %v973, %v979
        %v981 = vsel %vm465, %v980, -inf
        %982 = vmax.xlane.f32.xlu0 %v981
        %v983 = vpop.xlane.xlu0 %982
        %v984 = vsub.f32 %v980, %v983
        %v985 = vmul.f32 %v984, 1.442695
        %v986 = vpow.pop %v985
        %v987 = vsel %vm465, %v986, 0.0
        %988 = vadd.xlane.f32.xlu0 %v987
        %v989 = vpop.xlane.xlu0 %988
        %v990 = vrcp.pop %v989
        %v991 = vmul.f32 %v986, %v990
        %v992 = vpack.c.bf16 %v991, %v991
        %v994 = vunpack.c.l.b16 %v921
        %v995 = vpack.c.b16 %v994, %v994
        %996 = vrot.lane.b32.xlu0 %v995, 112
        %v997 = vpop.permute.xlu0 %996
        %v999 = vsel %vm465, %v992, 0
        %v1002 = vsel %vm481, %v997, 0
        %1004 = vmatprep.subr.bf16.mxu0 0
        %1005 = vmatpush1.bf16.msra.mxu0 %v1002
        %1006 = vmatprep.subr.bf16.mxu0 0
        %1007 = vmatpush1.bf16.msra.mxu0 0
        %1008 = vmatprep.subr.bf16.mxu0 0
        %1009 = vmatpush1.bf16.msra.mxu0 0
        %1010 = vmatprep.subr.bf16.mxu0 0
        %1011 = vmatpush1.bf16.msra.mxu0 0
        %1012 = vmatprep.subr.bf16.mxu0 0
        %1013 = vmatpush1.bf16.msra.mxu0 0
        %1014 = vmatprep.subr.bf16.mxu0 0
        %1015 = vmatpush1.bf16.msra.mxu0 0
        %1016 = vmatprep.subr.bf16.mxu0 0
        %1017 = vmatpush1.bf16.msra.mxu0 0
        %1018 = vmatprep.subr.bf16.mxu0 0
        %1019 = vmatpush1.bf16.msra.mxu0 0
        %1020 = vmatprep.subr.bf16.mxu0 0
        %1021 = vmatpush1.bf16.msra.mxu0 0
        %1022 = vmatprep.subr.bf16.mxu0 0
        %1023 = vmatpush1.bf16.msra.mxu0 0
        %1024 = vmatprep.subr.bf16.mxu0 0
        %1025 = vmatpush1.bf16.msra.mxu0 0
        %1026 = vmatprep.subr.bf16.mxu0 0
        %1027 = vmatpush1.bf16.msra.mxu0 0
        %1028 = vmatprep.subr.bf16.mxu0 0
        %1029 = vmatpush1.bf16.msra.mxu0 0
        %1030 = vmatprep.subr.bf16.mxu0 0
        %1031 = vmatpush1.bf16.msra.mxu0 0
        %1032 = vmatprep.subr.bf16.mxu0 0
        %1033 = vmatpush1.bf16.msra.mxu0 0
        %1034 = vmatprep.subr.bf16.mxu0 0
        %1035 = vmatpush1.bf16.msra.mxu0 0
        %1036 = vmatprep.mubr.bf16.mxu0 0
        %1037 = vmatmul.mubr.bf16.gmra.mrb[0].mxu0 %v999
        %v1038 = vpop.f32.mrb[0].mxu0
        %v1039 = vadd.f32 0.0, %v1038
        %v1040 = vpop.f32.mrb[0].mxu0
        %v1041 = vpop.f32.mrb[0].mxu0
        %v1042 = vpop.f32.mrb[0].mxu0
        %1043 = vdwg.mxu0
        %1045 = vrot.lane.b32.xlu0 %v1039, 16
        %v1046 = vpop.permute.xlu0 %1045
        %vm1048 = vcmask 162944
        %1049 = vst.msk [vmem:[%s397] sm:$0xff] %vm1048, %v1046
        %v1050 = vld [vmem:[%s322] sm:$0xf]
        %v1051 = vld [vmem:[%s331] sm:$0xf]
        %v1052 = vld [vmem:[%s340] sm:$0xf]
        %v1054 = vunpack.c.l.b16 %v1050
        %v1055 = vpack.c.b16 %v1054, %v1054
        %1056 = vrot.lane.b32.xlu0 %v1055, 108
        %v1057 = vpop.permute.xlu0 %1056
        %v1059 = vunpack.c.l.b16 %v1051
        %v1060 = vpack.c.b16 %v1059, %v1059
        %1061 = vrot.lane.b32.xlu0 %v1060, 108
        %v1062 = vpop.permute.xlu0 %1061
        %v1064 = vsel %vm416, %v1057, 0
        %v1067 = vsel %vm416, %v1062, 0
        %1069 = vmatprep.subr.bf16.mxu0 0
        %1070 = vmatpush1.bf16.xpose.msra.mxu0 %v1067
        %1071 = vmatprep.subr.bf16.mxu0 0
        %1072 = vmatpush1.bf16.xpose.msra.mxu0 0
        %1073 = vmatprep.subr.bf16.mxu0 0
        %1074 = vmatpush1.bf16.xpose.msra.mxu0 0
        %1075 = vmatprep.subr.bf16.mxu0 0
        %1076 = vmatpush1.bf16.xpose.msra.mxu0 0
        %1077 = vmatprep.subr.bf16.mxu0 0
        %1078 = vmatpush1.bf16.xpose.msra.mxu0 0
        %1079 = vmatprep.subr.bf16.mxu0 0
        %1080 = vmatpush1.bf16.xpose.msra.mxu0 0
        %1081 = vmatprep.subr.bf16.mxu0 0
        %1082 = vmatpush1.bf16.xpose.msra.mxu0 0
        %1083 = vmatprep.subr.bf16.mxu0 0
        %1084 = vmatpush1.bf16.xpose.msra.mxu0 0
        %1085 = vmatprep.subr.bf16.mxu0 0
        %1086 = vmatpush1.bf16.xpose.msra.mxu0 0
        %1087 = vmatprep.subr.bf16.mxu0 0
        %1088 = vmatpush1.bf16.xpose.msra.mxu0 0
        %1089 = vmatprep.subr.bf16.mxu0 0
        %1090 = vmatpush1.bf16.xpose.msra.mxu0 0
        %1091 = vmatprep.subr.bf16.mxu0 0
        %1092 = vmatpush1.bf16.xpose.msra.mxu0 0
        %1093 = vmatprep.subr.bf16.mxu0 0
        %1094 = vmatpush1.bf16.xpose.msra.mxu0 0
        %1095 = vmatprep.subr.bf16.mxu0 0
        %1096 = vmatpush1.bf16.xpose.msra.mxu0 0
        %1097 = vmatprep.subr.bf16.mxu0 0
        %1098 = vmatpush1.bf16.xpose.msra.mxu0 0
        %1099 = vmatprep.subr.bf16.mxu0 0
        %1100 = vmatpush1.bf16.xpose.msra.mxu0 0
        %1101 = vmatprep.mubr.bf16.mxu0 0
        %1102 = vmatmul.mubr.bf16.gmra.mrb[0].mxu0 %v1064
        %v1103 = vpop.f32.mrb[0].mxu0
        %v1104 = vadd.f32 %v414, %v1103
        %v1105 = vpop.f32.mrb[0].mxu0
        %v1106 = vpop.f32.mrb[0].mxu0
        %v1107 = vpop.f32.mrb[0].mxu0
        %1108 = vdwg.mxu0
        %s1109 = scalar_lea.vmem %s349, 40 [#allocation8]
        %v1110 = vld [vmem:[%s1109] sm:$0xff]
        %v1111 = vadd.f32 %v1104, %v1110
        %v1112 = vsel %vm465, %v1111, -inf
        %1113 = vmax.xlane.f32.xlu0 %v1112
        %v1114 = vpop.xlane.xlu0 %1113
        %v1115 = vsub.f32 %v1111, %v1114
        %v1116 = vmul.f32 %v1115, 1.442695
        %v1117 = vpow.pop %v1116
        %v1118 = vsel %vm465, %v1117, 0.0
        %1119 = vadd.xlane.f32.xlu0 %v1118
        %v1120 = vpop.xlane.xlu0 %1119
        %v1121 = vrcp.pop %v1120
        %v1122 = vmul.f32 %v1117, %v1121
        %v1123 = vpack.c.bf16 %v1122, %v1122
        %v1125 = vunpack.c.l.b16 %v1052
        %v1126 = vpack.c.b16 %v1125, %v1125
        %1127 = vrot.lane.b32.xlu0 %v1126, 108
        %v1128 = vpop.permute.xlu0 %1127
        %v1130 = vsel %vm465, %v1123, 0
        %v1133 = vsel %vm481, %v1128, 0
        %1135 = vmatprep.subr.bf16.mxu0 0
        %1136 = vmatpush1.bf16.msra.mxu0 %v1133
        %1137 = vmatprep.subr.bf16.mxu0 0
        %1138 = vmatpush1.bf16.msra.mxu0 0
        %1139 = vmatprep.subr.bf16.mxu0 0
        %1140 = vmatpush1.bf16.msra.mxu0 0
        %1141 = vmatprep.subr.bf16.mxu0 0
        %1142 = vmatpush1.bf16.msra.mxu0 0
        %1143 = vmatprep.subr.bf16.mxu0 0
        %1144 = vmatpush1.bf16.msra.mxu0 0
        %1145 = vmatprep.subr.bf16.mxu0 0
        %1146 = vmatpush1.bf16.msra.mxu0 0
        %1147 = vmatprep.subr.bf16.mxu0 0
        %1148 = vmatpush1.bf16.msra.mxu0 0
        %1149 = vmatprep.subr.bf16.mxu0 0
        %1150 = vmatpush1.bf16.msra.mxu0 0
        %1151 = vmatprep.subr.bf16.mxu0 0
        %1152 = vmatpush1.bf16.msra.mxu0 0
        %1153 = vmatprep.subr.bf16.mxu0 0
        %1154 = vmatpush1.bf16.msra.mxu0 0
        %1155 = vmatprep.subr.bf16.mxu0 0
        %1156 = vmatpush1.bf16.msra.mxu0 0
        %1157 = vmatprep.subr.bf16.mxu0 0
        %1158 = vmatpush1.bf16.msra.mxu0 0
        %1159 = vmatprep.subr.bf16.mxu0 0
        %1160 = vmatpush1.bf16.msra.mxu0 0
        %1161 = vmatprep.subr.bf16.mxu0 0
        %1162 = vmatpush1.bf16.msra.mxu0 0
        %1163 = vmatprep.subr.bf16.mxu0 0
        %1164 = vmatpush1.bf16.msra.mxu0 0
        %1165 = vmatprep.subr.bf16.mxu0 0
        %1166 = vmatpush1.bf16.msra.mxu0 0
        %1167 = vmatprep.mubr.bf16.mxu0 0
        %1168 = vmatmul.mubr.bf16.gmra.mrb[0].mxu0 %v1130
        %v1169 = vpop.f32.mrb[0].mxu0
        %v1170 = vadd.f32 0.0, %v1169
        %v1171 = vpop.f32.mrb[0].mxu0
        %v1172 = vpop.f32.mrb[0].mxu0
        %v1173 = vpop.f32.mrb[0].mxu0
        %1174 = vdwg.mxu0
        %1176 = vrot.lane.b32.xlu0 %v1170, 20
        %v1177 = vpop.permute.xlu0 %1176
        %vm1179 = vcmask 195744
        %1180 = vst.msk [vmem:[%s397] sm:$0xff] %vm1179, %v1177
        %v1181 = vld [vmem:[%s322] sm:$0xf]
        %v1182 = vld [vmem:[%s331] sm:$0xf]
        %v1183 = vld [vmem:[%s340] sm:$0xf]
        %v1185 = vunpack.c.l.b16 %v1181
        %v1186 = vpack.c.b16 %v1185, %v1185
        %1187 = vrot.lane.b32.xlu0 %v1186, 104
        %v1188 = vpop.permute.xlu0 %1187
        %v1190 = vunpack.c.l.b16 %v1182
        %v1191 = vpack.c.b16 %v1190, %v1190
        %1192 = vrot.lane.b32.xlu0 %v1191, 104
        %v1193 = vpop.permute.xlu0 %1192
        %v1195 = vsel %vm416, %v1188, 0
        %v1198 = vsel %vm416, %v1193, 0
        %1200 = vmatprep.subr.bf16.mxu0 0
        %1201 = vmatpush1.bf16.xpose.msra.mxu0 %v1198
        %1202 = vmatprep.subr.bf16.mxu0 0
        %1203 = vmatpush1.bf16.xpose.msra.mxu0 0
        %1204 = vmatprep.subr.bf16.mxu0 0
        %1205 = vmatpush1.bf16.xpose.msra.mxu0 0
        %1206 = vmatprep.subr.bf16.mxu0 0
        %1207 = vmatpush1.bf16.xpose.msra.mxu0 0
        %1208 = vmatprep.subr.bf16.mxu0 0
        %1209 = vmatpush1.bf16.xpose.msra.mxu0 0
        %1210 = vmatprep.subr.bf16.mxu0 0
        %1211 = vmatpush1.bf16.xpose.msra.mxu0 0
        %1212 = vmatprep.subr.bf16.mxu0 0
        %1213 = vmatpush1.bf16.xpose.msra.mxu0 0
        %1214 = vmatprep.subr.bf16.mxu0 0
        %1215 = vmatpush1.bf16.xpose.msra.mxu0 0
        %1216 = vmatprep.subr.bf16.mxu0 0
        %1217 = vmatpush1.bf16.xpose.msra.mxu0 0
        %1218 = vmatprep.subr.bf16.mxu0 0
        %1219 = vmatpush1.bf16.xpose.msra.mxu0 0
        %1220 = vmatprep.subr.bf16.mxu0 0
        %1221 = vmatpush1.bf16.xpose.msra.mxu0 0
        %1222 = vmatprep.subr.bf16.mxu0 0
        %1223 = vmatpush1.bf16.xpose.msra.mxu0 0
        %1224 = vmatprep.subr.bf16.mxu0 0
        %1225 = vmatpush1.bf16.xpose.msra.mxu0 0
        %1226 = vmatprep.subr.bf16.mxu0 0
        %1227 = vmatpush1.bf16.xpose.msra.mxu0 0
        %1228 = vmatprep.subr.bf16.mxu0 0
        %1229 = vmatpush1.bf16.xpose.msra.mxu0 0
        %1230 = vmatprep.subr.bf16.mxu0 0
        %1231 = vmatpush1.bf16.xpose.msra.mxu0 0
        %1232 = vmatprep.mubr.bf16.mxu0 0
        %1233 = vmatmul.mubr.bf16.gmra.mrb[0].mxu0 %v1195
        %v1234 = vpop.f32.mrb[0].mxu0
        %v1235 = vadd.f32 %v414, %v1234
        %v1236 = vpop.f32.mrb[0].mxu0
        %v1237 = vpop.f32.mrb[0].mxu0
        %v1238 = vpop.f32.mrb[0].mxu0
        %1239 = vdwg.mxu0
        %s1240 = scalar_lea.vmem %s349, 48 [#allocation8]
        %v1241 = vld [vmem:[%s1240] sm:$0xff]
        %v1242 = vadd.f32 %v1235, %v1241
        %v1243 = vsel %vm465, %v1242, -inf
        %1244 = vmax.xlane.f32.xlu0 %v1243
        %v1245 = vpop.xlane.xlu0 %1244
        %v1246 = vsub.f32 %v1242, %v1245
        %v1247 = vmul.f32 %v1246, 1.442695
        %v1248 = vpow.pop %v1247
        %v1249 = vsel %vm465, %v1248, 0.0
        %1250 = vadd.xlane.f32.xlu0 %v1249
        %v1251 = vpop.xlane.xlu0 %1250
        %v1252 = vrcp.pop %v1251
        %v1253 = vmul.f32 %v1248, %v1252
        %v1254 = vpack.c.bf16 %v1253, %v1253
        %v1256 = vunpack.c.l.b16 %v1183
        %v1257 = vpack.c.b16 %v1256, %v1256
        %1258 = vrot.lane.b32.xlu0 %v1257, 104
        %v1259 = vpop.permute.xlu0 %1258
        %v1261 = vsel %vm465, %v1254, 0
        %v1264 = vsel %vm481, %v1259, 0
        %1266 = vmatprep.subr.bf16.mxu0 0
        %1267 = vmatpush1.bf16.msra.mxu0 %v1264
        %1268 = vmatprep.subr.bf16.mxu0 0
        %1269 = vmatpush1.bf16.msra.mxu0 0
        %1270 = vmatprep.subr.bf16.mxu0 0
        %1271 = vmatpush1.bf16.msra.mxu0 0
        %1272 = vmatprep.subr.bf16.mxu0 0
        %1273 = vmatpush1.bf16.msra.mxu0 0
        %1274 = vmatprep.subr.bf16.mxu0 0
        %1275 = vmatpush1.bf16.msra.mxu0 0
        %1276 = vmatprep.subr.bf16.mxu0 0
        %1277 = vmatpush1.bf16.msra.mxu0 0
        %1278 = vmatprep.subr.bf16.mxu0 0
        %1279 = vmatpush1.bf16.msra.mxu0 0
        %1280 = vmatprep.subr.bf16.mxu0 0
        %1281 = vmatpush1.bf16.msra.mxu0 0
        %1282 = vmatprep.subr.bf16.mxu0 0
        %1283 = vmatpush1.bf16.msra.mxu0 0
        %1284 = vmatprep.subr.bf16.mxu0 0
        %1285 = vmatpush1.bf16.msra.mxu0 0
        %1286 = vmatprep.subr.bf16.mxu0 0
        %1287 = vmatpush1.bf16.msra.mxu0 0
        %1288 = vmatprep.subr.bf16.mxu0 0
        %1289 = vmatpush1.bf16.msra.mxu0 0
        %1290 = vmatprep.subr.bf16.mxu0 0
        %1291 = vmatpush1.bf16.msra.mxu0 0
        %1292 = vmatprep.subr.bf16.mxu0 0
        %1293 = vmatpush1.bf16.msra.mxu0 0
        %1294 = vmatprep.subr.bf16.mxu0 0
        %1295 = vmatpush1.bf16.msra.mxu0 0
        %1296 = vmatprep.subr.bf16.mxu0 0
        %1297 = vmatpush1.bf16.msra.mxu0 0
        %1298 = vmatprep.mubr.bf16.mxu0 0
        %1299 = vmatmul.mubr.bf16.gmra.mrb[0].mxu0 %v1261
        %v1300 = vpop.f32.mrb[0].mxu0
        %v1301 = vadd.f32 0.0, %v1300
        %v1302 = vpop.f32.mrb[0].mxu0
        %v1303 = vpop.f32.mrb[0].mxu0
        %v1304 = vpop.f32.mrb[0].mxu0
        %1305 = vdwg.mxu0
        %1307 = vrot.lane.b32.xlu0 %v1301, 24
        %v1308 = vpop.permute.xlu0 %1307
        %vm1310 = vcmask 228544
        %1311 = vst.msk [vmem:[%s397] sm:$0xff] %vm1310, %v1308
        %v1312 = vld [vmem:[%s322] sm:$0xf]
        %v1313 = vld [vmem:[%s331] sm:$0xf]
        %v1314 = vld [vmem:[%s340] sm:$0xf]
        %v1316 = vunpack.c.l.b16 %v1312
        %v1317 = vpack.c.b16 %v1316, %v1316
        %1318 = vrot.lane.b32.xlu0 %v1317, 100
        %v1319 = vpop.permute.xlu0 %1318
        %v1321 = vunpack.c.l.b16 %v1313
        %v1322 = vpack.c.b16 %v1321, %v1321
        %1323 = vrot.lane.b32.xlu0 %v1322, 100
        %v1324 = vpop.permute.xlu0 %1323
        %v1326 = vsel %vm416, %v1319, 0
        %v1329 = vsel %vm416, %v1324, 0
        %1331 = vmatprep.subr.bf16.mxu0 0
        %1332 = vmatpush1.bf16.xpose.msra.mxu0 %v1329
        %1333 = vmatprep.subr.bf16.mxu0 0
        %1334 = vmatpush1.bf16.xpose.msra.mxu0 0
        %1335 = vmatprep.subr.bf16.mxu0 0
        %1336 = vmatpush1.bf16.xpose.msra.mxu0 0
        %1337 = vmatprep.subr.bf16.mxu0 0
        %1338 = vmatpush1.bf16.xpose.msra.mxu0 0
        %1339 = vmatprep.subr.bf16.mxu0 0
        %1340 = vmatpush1.bf16.xpose.msra.mxu0 0
        %1341 = vmatprep.subr.bf16.mxu0 0
        %1342 = vmatpush1.bf16.xpose.msra.mxu0 0
        %1343 = vmatprep.subr.bf16.mxu0 0
        %1344 = vmatpush1.bf16.xpose.msra.mxu0 0
        %1345 = vmatprep.subr.bf16.mxu0 0
        %1346 = vmatpush1.bf16.xpose.msra.mxu0 0
        %1347 = vmatprep.subr.bf16.mxu0 0
        %1348 = vmatpush1.bf16.xpose.msra.mxu0 0
        %1349 = vmatprep.subr.bf16.mxu0 0
        %1350 = vmatpush1.bf16.xpose.msra.mxu0 0
        %1351 = vmatprep.subr.bf16.mxu0 0
        %1352 = vmatpush1.bf16.xpose.msra.mxu0 0
        %1353 = vmatprep.subr.bf16.mxu0 0
        %1354 = vmatpush1.bf16.xpose.msra.mxu0 0
        %1355 = vmatprep.subr.bf16.mxu0 0
        %1356 = vmatpush1.bf16.xpose.msra.mxu0 0
        %1357 = vmatprep.subr.bf16.mxu0 0
        %1358 = vmatpush1.bf16.xpose.msra.mxu0 0
        %1359 = vmatprep.subr.bf16.mxu0 0
        %1360 = vmatpush1.bf16.xpose.msra.mxu0 0
        %1361 = vmatprep.subr.bf16.mxu0 0
        %1362 = vmatpush1.bf16.xpose.msra.mxu0 0
        %1363 = vmatprep.mubr.bf16.mxu0 0
        %1364 = vmatmul.mubr.bf16.gmra.mrb[0].mxu0 %v1326
        %v1365 = vpop.f32.mrb[0].mxu0
        %v1366 = vadd.f32 %v414, %v1365
        %v1367 = vpop.f32.mrb[0].mxu0
        %v1368 = vpop.f32.mrb[0].mxu0
        %v1369 = vpop.f32.mrb[0].mxu0
        %1370 = vdwg.mxu0
        %s1371 = scalar_lea.vmem %s349, 56 [#allocation8]
        %v1372 = vld [vmem:[%s1371] sm:$0xff]
        %v1373 = vadd.f32 %v1366, %v1372
        %v1374 = vsel %vm465, %v1373, -inf
        %1375 = vmax.xlane.f32.xlu0 %v1374
        %v1376 = vpop.xlane.xlu0 %1375
        %v1377 = vsub.f32 %v1373, %v1376
        %v1378 = vmul.f32 %v1377, 1.442695
        %v1379 = vpow.pop %v1378
        %v1380 = vsel %vm465, %v1379, 0.0
        %1381 = vadd.xlane.f32.xlu0 %v1380
        %v1382 = vpop.xlane.xlu0 %1381
        %v1383 = vrcp.pop %v1382
        %v1384 = vmul.f32 %v1379, %v1383
        %v1385 = vpack.c.bf16 %v1384, %v1384
        %v1387 = vunpack.c.l.b16 %v1314
        %v1388 = vpack.c.b16 %v1387, %v1387
        %1389 = vrot.lane.b32.xlu0 %v1388, 100
        %v1390 = vpop.permute.xlu0 %1389
        %v1392 = vsel %vm465, %v1385, 0
        %v1395 = vsel %vm481, %v1390, 0
        %1397 = vmatprep.subr.bf16.mxu0 0
        %1398 = vmatpush1.bf16.msra.mxu0 %v1395
        %1399 = vmatprep.subr.bf16.mxu0 0
        %1400 = vmatpush1.bf16.msra.mxu0 0
        %1401 = vmatprep.subr.bf16.mxu0 0
        %1402 = vmatpush1.bf16.msra.mxu0 0
        %1403 = vmatprep.subr.bf16.mxu0 0
        %1404 = vmatpush1.bf16.msra.mxu0 0
        %1405 = vmatprep.subr.bf16.mxu0 0
        %1406 = vmatpush1.bf16.msra.mxu0 0
        %1407 = vmatprep.subr.bf16.mxu0 0
        %1408 = vmatpush1.bf16.msra.mxu0 0
        %1409 = vmatprep.subr.bf16.mxu0 0
        %1410 = vmatpush1.bf16.msra.mxu0 0
        %1411 = vmatprep.subr.bf16.mxu0 0
        %1412 = vmatpush1.bf16.msra.mxu0 0
        %1413 = vmatprep.subr.bf16.mxu0 0
        %1414 = vmatpush1.bf16.msra.mxu0 0
        %1415 = vmatprep.subr.bf16.mxu0 0
        %1416 = vmatpush1.bf16.msra.mxu0 0
        %1417 = vmatprep.subr.bf16.mxu0 0
        %1418 = vmatpush1.bf16.msra.mxu0 0
        %1419 = vmatprep.subr.bf16.mxu0 0
        %1420 = vmatpush1.bf16.msra.mxu0 0
        %1421 = vmatprep.subr.bf16.mxu0 0
        %1422 = vmatpush1.bf16.msra.mxu0 0
        %1423 = vmatprep.subr.bf16.mxu0 0
        %1424 = vmatpush1.bf16.msra.mxu0 0
        %1425 = vmatprep.subr.bf16.mxu0 0
        %1426 = vmatpush1.bf16.msra.mxu0 0
        %1427 = vmatprep.subr.bf16.mxu0 0
        %1428 = vmatpush1.bf16.msra.mxu0 0
        %1429 = vmatprep.mubr.bf16.mxu0 0
        %1430 = vmatmul.mubr.bf16.gmra.mrb[0].mxu0 %v1392
        %v1431 = vpop.f32.mrb[0].mxu0
        %v1432 = vadd.f32 0.0, %v1431
        %v1433 = vpop.f32.mrb[0].mxu0
        %v1434 = vpop.f32.mrb[0].mxu0
        %v1435 = vpop.f32.mrb[0].mxu0
        %1436 = vdwg.mxu0
        %1438 = vrot.lane.b32.xlu0 %v1432, 28
        %v1439 = vpop.permute.xlu0 %1438
        %vm1441 = vcmask 261344
        %1442 = vst.msk [vmem:[%s397] sm:$0xff] %vm1441, %v1439
        %s1443 = sand.u32 %s188, 1
        %s1444 = scalar_lea.sflag [#allocation4], %s1443
        %s1445 = sand.u32 %s188, 1
        %s1446 = smul.addr %s1445, 8
        %s1447 = scalar_lea.vmem [#allocation10], %s1446
        // Predicated region
        $region57: #{tpu_custom_call.1} parent=39 // pred_check
          %p1448 = pneg %p198
        $region58: #{tpu_custom_call.1} parent=39 // pred_check_branch
          %1450 = sbr.rel (%p1448) target = $region60
        $region59: #{tpu_custom_call.1} parent=39 // pred_region
          %s1452 = ssub.s32 128, 128
          %1453 = vsyncadd %s1444, %s1452
          %s1454 = smul.addr %s32, 2
          %s1455 = sadd.s32 %s33, %s1454
          %s1456 = smul.addr %s1455, 128
          %s1457 = scalar_lea.hbm %s5, %s1456
          %s1459 = sshll.u32 %s1447, 4
          %s1460 = int_to_ptr.vmem [resolvable:$true] %s1459
          %1462 = dma.vmem_to_hbm [thread:$0]  %s1460, 128, %s1457, %s1444
        $region60: #{tpu_custom_call.1} parent=39 // pred_fallthru
          _
      $region40: #{tpu_custom_call.1} parent=5 // pred_fallthru
        _
      %p1463 = scmp.le.s32.totalorder 2, %s23
      // Predicated region
      $region61: #{tpu_custom_call.1} parent=5 // pred_check
        %p1464 = pneg %p1463
      $region62: #{tpu_custom_call.1} parent=5 // pred_check_branch
        %1466 = sbr.rel (%p1464) target = $region64
      $region63: #{tpu_custom_call.1} parent=5 // pred_region
        %s1467 = ssub.s32 %s23, 2
        // Predicated region
        $region65: #{tpu_custom_call.1} parent=63 // pred_check
          %p1468 = pneg %p204
        $region66: #{tpu_custom_call.1} parent=63 // pred_check_branch
          %1470 = sbr.rel (%p1468) target = $region68
        $region67: #{tpu_custom_call.1} parent=63 // pred_region
          %s1471 = sand.u32 %s189, 1
          %s1472 = scalar_lea.sflag [#allocation4], %s1471
          %s1473 = sand.u32 %s189, 1
          %s1474 = smul.addr %s1473, 8
          %s1475 = scalar_lea.vmem [#allocation10], %s1474
          %1476 = dma.done %s1472, 128
        $region68: #{tpu_custom_call.1} parent=63 // pred_fallthru
          _
      $region64: #{tpu_custom_call.1} parent=5 // pred_fallthru
        _
    $region6: #{tpu_custom_call.1} parent=1 // loop_footer
      %s27 = sadd.s32 1, %s23
    $region7: #{tpu_custom_call.1} parent=1 // loop_footer_branch
      %22 = sbr.rel target = $region3
    $region8: #{tpu_custom_call.1} parent=1 // loop_exit
      _
    %1477 = vsyncpa [#allocation3], 1
    %s1478 = scalar_lea.sflag [#allocation3], 1
    %1479 = vsyncpa %s1478, 1
    %1480 = vsyncpa [#allocation6], 1
    %s1481 = scalar_lea.sflag [#allocation6], 1
    %1482 = vsyncpa %s1481, 1
    %1483 = vsyncpa [#allocation9], 1
    %s1484 = scalar_lea.sflag [#allocation9], 1
    %1485 = vsyncpa %s1484, 1
    %1486 = vsyncpa [#allocation4], 1
    %s1487 = scalar_lea.sflag [#allocation4], 1
    %1488 = vsyncpa %s1487, 1

</llo_original>
